<compile_context>
chip_gen: v5e
topology: v5e:2x2
jax: 0.10.0
libtpu: 0.0.40
codegen_flags: <defaults>
</compile_context>

<pallas_src>
import functools
import math

import jax
import jax.numpy as jnp
from jax.experimental import pallas as pl
from jax.experimental.pallas import tpu as pltpu

BN_EPS = 1e-5
VMEM_LIMIT = 32 * 1024 * 1024  # explicit scoped-VMEM cap; safe on v5e/v6e/v7x


# ----------------------------- Pallas kernels --------------------------------

def conv1_stats_kernel(xf_ref, w1_ref, cm_ref, h_ref, stats_ref, patch_ref, *, H, W, Wp):
    """Per-image 3x3 conv as ONE matmul over a flat row-shifted im2col patch, plus
    per-image per-channel (sum, sum_sq) partials for streaming BatchNorm statistics.

    xf_ref:    (1, Cin, (H+3)*Wp) bf16  zero-padded image, rows flattened (Wp = W+2)
    w1_ref:    (Cout, 9*Cin)      bf16  conv1 weight, column = (dy*3+dx)*Cin + ci
    cm_ref:    (1, H*Wp)          f32   1.0 on real columns, 0.0 on wrap-around cols
    h_ref:     (1, Cout, H*Wp)    bf16  raw conv1 output (pre-BN), lane-dense
    stats_ref: (1, Cout, 2)       f32   [sum, sum_sq] over this image's valid pixels
    patch_ref: (9*Cin, H*Wp)      bf16  VMEM scratch: im2col patch
    """
    cin = xf_ref.shape[1]
    L = H * Wp
    for dy in range(3):
        for dx in range(3):
            t = dy * 3 + dx
            off = dy * Wp + dx
            patch_ref[t * cin:(t + 1) * cin, :] = xf_ref[0, :, off:off + L]
    acc = jnp.dot(w1_ref[...], patch_ref[...],
                  preferred_element_type=jnp.float32)            # (Cout, L) f32
    h_ref[0] = acc.astype(h_ref.dtype)                           # bf16, lane-dense store
    am = acc * cm_ref[...]                                       # mask wrap-around cols
    stats_ref[0, :, 0:1] = jnp.sum(am, axis=1, keepdims=True)
    stats_ref[0, :, 1:2] = jnp.sum(am * am, axis=1, keepdims=True)


def bn_relu_conv2_kernel(h_ref, sb_ref, w2_ref, cm_ref, o_ref, p2f_ref, patch_ref,
                         *, H, W, Wp):
    """Fused BN-apply (precomputed scale/shift) + ReLU + 3x3 conv2 (single matmul).

    h_ref:     (1, Cout, H*Wp)     bf16  raw conv1 output for this image
    sb_ref:    (Cout, 2)           f32   col 0 = scale (gamma*inv_std), col 1 = shift
    w2_ref:    (Cout, 9*Cout)      bf16  conv2 weight, column = (dy*3+dx)*Cout + co
    cm_ref:    (1, H*Wp)           f32   validity mask (zeros wrap-around columns)
    o_ref:     (1, Cout, H*Wp)     f32   conv2 output (2 junk cols/row dropped by XLA)
    p2f_ref:   (Cout, (H+3)*Wp)    bf16  VMEM scratch: flat zero-halo'd activation
    patch_ref: (9*Cout, H*Wp)      bf16  VMEM scratch: im2col patch for conv2
    """
    cout = h_ref.shape[1]
    L = H * Wp
    L2 = p2f_ref.shape[1]
    scale = sb_ref[:, 0:1]                                       # (Cout, 1) f32
    shift = sb_ref[:, 1:2]
    # BN + ReLU in f32; mask wrap-around columns so they become the zero halo below.
    r = jnp.maximum(h_ref[0].astype(jnp.float32) * scale + shift, 0.0) * cm_ref[...]
    # Flat zero-padded layout: interior pixel (h, w) lives at flat (1+h)*Wp + (1+w).
    # Only the halo head/tail need explicit zeroing; the interior (incl. the masked
    # columns that land exactly on the left/right halo of each row) is written below.
    p2f_ref[:, 0:Wp + 1] = jnp.zeros((cout, Wp + 1), p2f_ref.dtype)
    p2f_ref[:, Wp + 1:Wp + 1 + L] = r.astype(p2f_ref.dtype)
    p2f_ref[:, Wp + 1 + L:L2] = jnp.zeros((cout, L2 - (Wp + 1 + L)), p2f_ref.dtype)
    for dy in range(3):
        for dx in range(3):
            t = dy * 3 + dx
            off = dy * Wp + dx
            patch_ref[t * cout:(t + 1) * cout, :] = p2f_ref[:, off:off + L]
    o_ref[0] = jnp.dot(w2_ref[...], patch_ref[...],
                       preferred_element_type=jnp.float32)       # (Cout, L) f32


# ------------------------------- JAX wrapper -----------------------------------

def _w_to_mat(w_oihw):
    """PyTorch (Cout, Cin, 3, 3) -> (Cout, 9*Cin) bf16, column = (dy*3+dx)*Cin + ci."""
    cout, cin = w_oihw.shape[0], w_oihw.shape[1]
    return jnp.transpose(w_oihw, (0, 2, 3, 1)).reshape(cout, 9 * cin).astype(jnp.bfloat16)


@jax.jit
def nhlbi_resunet_input_block(x_nchw, w1, w2, gamma, beta):
    """Forward pass of NHLBIResUnetInputBlock (stride=1, use_dropout=False, bias-free convs)."""
    N, Cin, H, W = x_nchw.shape
    Cout = w1.shape[0]
    Wp = W + 2                       # padded row width
    L = H * Wp                       # per-image flat conv-output length (2 junk cols/row)
    Lin = (H + 3) * Wp               # flat padded input length (1 top + 2 bottom halo rows)
    M = N * H * W                    # number of valid pixels for BN statistics

    # Stay channel-major (NCHW): pad spatially, flatten rows, cast matmul operand to bf16.
    xpad = jnp.pad(x_nchw.astype(jnp.float32), ((0, 0), (0, 0), (1, 2), (1, 1)))
    xf = xpad.reshape(N, Cin, Lin).astype(jnp.bfloat16)

    w1m = _w_to_mat(w1)              # (Cout, 9*Cin)  bf16
    w2m = _w_to_mat(w2)              # (Cout, 9*Cout) bf16

    # Validity mask over the flat spatial axis (zeros the 2 wrap-around cols per row).
    cm = (jnp.arange(L) % Wp < W).astype(jnp.float32).reshape(1, L)

    cparams = pltpu.CompilerParams(
        dimension_semantics=("parallel",), vmem_limit_bytes=VMEM_LIMIT)

    # ---- pass 1: conv1 (single matmul) + streaming BN partials, one image per step ----
    h1, stats = pl.pallas_call(
        functools.partial(conv1_stats_kernel, H=H, W=W, Wp=Wp),
        out_shape=(jax.ShapeDtypeStruct((N, Cout, L), jnp.bfloat16),
                   jax.ShapeDtypeStruct((N, Cout, 2), jnp.float32)),
        grid=(N,),
        in_specs=[
            pl.BlockSpec((1, Cin, Lin), lambda n: (n, 0, 0)),
            pl.BlockSpec((Cout, 9 * Cin), lambda n: (0, 0)),
            pl.BlockSpec((1, L), lambda n: (0, 0)),
        ],
        out_specs=(
            pl.BlockSpec((1, Cout, L), lambda n: (n, 0, 0)),
            pl.BlockSpec((1, Cout, 2), lambda n: (n, 0, 0)),
        ),
        scratch_shapes=[pltpu.VMEM((9 * Cin, L), jnp.bfloat16)],
        compiler_params=cparams,
    )(xf, w1m, cm)

    # ---- tiny BN finalize in plain JAX: fold gamma/beta into scale/shift (f32) --------
    s = jnp.sum(stats, axis=0)                              # (Cout, 2)
    mean = s[:, 0] / M
    var = jnp.maximum(s[:, 1] / M - mean * mean, 0.0)       # biased batch variance
    inv_std = jax.lax.rsqrt(var + BN_EPS)
    scale = gamma.astype(jnp.float32) * inv_std
    shift = beta.astype(jnp.float32) - mean * scale
    sb = jnp.stack([scale, shift], axis=1)                  # (Cout, 2) f32

    # ---- pass 2: fused BN-apply + ReLU + conv2 (single matmul), one image per step ----
    out_flat = pl.pallas_call(
        functools.partial(bn_relu_conv2_kernel, H=H, W=W, Wp=Wp),
        out_shape=jax.ShapeDtypeStruct((N, Cout, L), jnp.float32),
        grid=(N,),
        in_specs=[
            pl.BlockSpec((1, Cout, L), lambda n: (n, 0, 0)),
            pl.BlockSpec((Cout, 2), lambda n: (0, 0)),
            pl.BlockSpec((Cout, 9 * Cout), lambda n: (0, 0)),
            pl.BlockSpec((1, L), lambda n: (0, 0)),
        ],
        out_specs=pl.BlockSpec((1, Cout, L), lambda n: (n, 0, 0)),
        scratch_shapes=[pltpu.VMEM((Cout, Lin), jnp.bfloat16),
                        pltpu.VMEM((9 * Cout, L), jnp.bfloat16)],
        compiler_params=cparams,
    )(h1, sb, w2m, cm)

    # TODO(synk): use_dropout branch (nn.Dropout) not implemented; module default is False.
    # TODO(synk): conv3x3 is assumed bias-free (standard ResUNet conv3x3); biases are dropped.
    # Drop the 2 wrap-around columns per row -> NCHW output directly (no transpose).
    return out_flat.reshape(N, Cout, H, Wp)[:, :, :, :W]


# ------------------------------ pure-JAX reference -----------------------------

def ref_forward(x_nchw, w1, w2, gamma, beta):
    dn = jax.lax.conv_dimension_numbers(x_nchw.shape, w1.shape, ("NCHW", "OIHW", "NCHW"))
    c1 = jax.lax.conv_general_dilated(x_nchw, w1, (1, 1), ((1, 1), (1, 1)),
                                      dimension_numbers=dn)
    mu = jnp.mean(c1, axis=(0, 2, 3), keepdims=True)
    var = jnp.mean((c1 - mu) ** 2, axis=(0, 2, 3), keepdims=True)
    bn = (c1 - mu) * jax.lax.rsqrt(var + BN_EPS)
    bn = bn * gamma.reshape(1, -1, 1, 1) + beta.reshape(1, -1, 1, 1)
    r = jnp.maximum(bn, 0.0)
    return jax.lax.conv_general_dilated(r, w2, (1, 1), ((1, 1), (1, 1)),
                                        dimension_numbers=dn)


# ----------------------------------- main --------------------------------------

if __name__ == "__main__":
    key = jax.random.PRNGKey(0)
    kx, k1, k2 = jax.random.split(key, 3)

    N, Cin, H, W = 2, 4, 16, 16        # inplanes=4, H=W=16
    Cout = 8                           # planes=8

    x = jax.random.normal(kx, (N, Cin, H, W), dtype=jnp.float32)

    # kaiming_normal_(mode='fan_out', nonlinearity='relu'): std = sqrt(2 / (Cout*3*3))
    std = math.sqrt(2.0 / (Cout * 3 * 3))
    w1 = jax.random.normal(k1, (Cout, Cin, 3, 3), dtype=jnp.float32) * std
    w2 = jax.random.normal(k2, (Cout, Cout, 3, 3), dtype=jnp.float32) * std
    gamma = jnp.ones((Cout,), jnp.float32)   # BatchNorm2d default init
    beta = jnp.zeros((Cout,), jnp.float32)

    out = jax.block_until_ready(nhlbi_resunet_input_block(x, w1, w2, gamma, beta))
    ref = jax.block_until_ready(ref_forward(x, w1, w2, gamma, beta))

    assert out.shape == (N, Cout, H, W), out.shape
    max_err = float(jnp.max(jnp.abs(out - ref)))
    mean_err = float(jnp.mean(jnp.abs(out - ref)))
    # bf16 MXU operands (~2^-8 relative precision) + bf16 h1 intermediate vs f32 reference.
    assert max_err < 1e-1 and mean_err < 2e-2, (max_err, mean_err)
    print("KERNEL_OK")
</pallas_src>

<mosaic_0001>
module attributes {stable_mosaic.version = 11 : i64} {
  func.func @bn_relu_conv2_kernel(%arg0: i32, %arg1: memref<1x8x288xbf16, #tpu.memory_space<vmem>>, %arg2: memref<8x2xf32, #tpu.memory_space<vmem>>, %arg3: memref<8x72xbf16, #tpu.memory_space<vmem>>, %arg4: memref<1x288xf32, #tpu.memory_space<vmem>>, %arg5: memref<1x8x288xf32, #tpu.memory_space<vmem>>, %arg6: memref<8x342xbf16, #tpu.memory_space<vmem>>, %arg7: memref<72x288xbf16, #tpu.memory_space<vmem>>) attributes {dimension_semantics = [#tpu.dimension_semantics<parallel>], iteration_bounds = array<i64: 2>, scalar_prefetch = 0 : i64, scratch_operands = 2 : i64, tpu.core_type = #tpu.core_type<tc>, window_params = [{transform_indices = @transform_0, window_bounds = array<i64: 1, 8, 288>}, {pipeline_mode = #tpu.pipeline_mode<synchronous>, transform_indices = @transform_1, window_bounds = array<i64: 8, 2>}, {pipeline_mode = #tpu.pipeline_mode<synchronous>, transform_indices = @transform_2, window_bounds = array<i64: 8, 72>}, {pipeline_mode = #tpu.pipeline_mode<synchronous>, transform_indices = @transform_3, window_bounds = array<i64: 1, 288>}, {transform_indices = @transform_4, window_bounds = array<i64: 1, 8, 288>}]} {
    %c0 = arith.constant 0 : index
    %c0_0 = arith.constant 0 : index
    %0 = vector.load %arg2[%c0, %c0_0] : memref<8x2xf32, #tpu.memory_space<vmem>>, vector<8x1xf32>
    %c0_1 = arith.constant 0 : index
    %c1 = arith.constant 1 : index
    %1 = vector.load %arg2[%c0_1, %c1] : memref<8x2xf32, #tpu.memory_space<vmem>>, vector<8x1xf32>
    %c0_2 = arith.constant 0 : index
    %c0_3 = arith.constant 0 : index
    %c0_4 = arith.constant 0 : index
    %2 = vector.load %arg1[%c0_2, %c0_3, %c0_4] : memref<1x8x288xbf16, #tpu.memory_space<vmem>>, vector<1x8x288xbf16>
    %3 = vector.shape_cast %2 : vector<1x8x288xbf16> to vector<8x288xbf16>
    %4 = arith.extf %3 : vector<8x288xbf16> to vector<8x288xf32>
    %5 = vector.broadcast %0 : vector<8x1xf32> to vector<8x288xf32>
    %6 = arith.mulf %4, %5 : vector<8x288xf32>
    %7 = vector.broadcast %1 : vector<8x1xf32> to vector<8x288xf32>
    %8 = arith.addf %6, %7 : vector<8x288xf32>
    %cst = arith.constant 0.000000e+00 : f32
    %9 = vector.broadcast %cst : f32 to vector<8x288xf32>
    %10 = arith.maximumf %8, %9 : vector<8x288xf32>
    %c0_5 = arith.constant 0 : index
    %c0_6 = arith.constant 0 : index
    %11 = vector.load %arg4[%c0_5, %c0_6] : memref<1x288xf32, #tpu.memory_space<vmem>>, vector<1x288xf32>
    %12 = vector.broadcast %11 : vector<1x288xf32> to vector<8x288xf32>
    %13 = arith.mulf %10, %12 : vector<8x288xf32>
    %cst_7 = arith.constant 0.000000e+00 : bf16
    %14 = vector.broadcast %cst_7 : bf16 to vector<8x19xbf16>
    %c0_8 = arith.constant 0 : index
    %c0_9 = arith.constant 0 : index
    %15 = vector.load %arg6[%c0_8, %c0_9] : memref<8x342xbf16, #tpu.memory_space<vmem>>, vector<8x19xbf16>
    tpu.vector_store %arg6[%c0_8, %c0_9], %14 {strides = array<i32>} : memref<8x342xbf16, #tpu.memory_space<vmem>>, vector<8x19xbf16>,
    %16 = arith.truncf %13 : vector<8x288xf32> to vector<8x288xbf16>
    %c0_10 = arith.constant 0 : index
    %c19 = arith.constant 19 : index
    %17 = vector.load %arg6[%c0_10, %c19] : memref<8x342xbf16, #tpu.memory_space<vmem>>, vector<8x288xbf16>
    tpu.vector_store %arg6[%c0_10, %c19], %16 {strides = array<i32>} : memref<8x342xbf16, #tpu.memory_space<vmem>>, vector<8x288xbf16>,
    %cst_11 = arith.constant 0.000000e+00 : bf16
    %18 = vector.broadcast %cst_11 : bf16 to vector<8x35xbf16>
    %c0_12 = arith.constant 0 : index
    %c307 = arith.constant 307 : index
    %19 = vector.load %arg6[%c0_12, %c307] : memref<8x342xbf16, #tpu.memory_space<vmem>>, vector<8x35xbf16>
    tpu.vector_store %arg6[%c0_12, %c307], %18 {strides = array<i32>} : memref<8x342xbf16, #tpu.memory_space<vmem>>, vector<8x35xbf16>,
    %c0_13 = arith.constant 0 : index
    %c0_14 = arith.constant 0 : index
    %20 = vector.load %arg6[%c0_13, %c0_14] : memref<8x342xbf16, #tpu.memory_space<vmem>>, vector<8x288xbf16>
    %c0_15 = arith.constant 0 : index
    %c0_16 = arith.constant 0 : index
    %21 = vector.load %arg7[%c0_15, %c0_16] : memref<72x288xbf16, #tpu.memory_space<vmem>>, vector<8x288xbf16>
    tpu.vector_store %arg7[%c0_15, %c0_16], %20 {strides = array<i32>} : memref<72x288xbf16, #tpu.memory_space<vmem>>, vector<8x288xbf16>,
    %c0_17 = arith.constant 0 : index
    %c1_18 = arith.constant 1 : index
    %22 = vector.load %arg6[%c0_17, %c1_18] : memref<8x342xbf16, #tpu.memory_space<vmem>>, vector<8x288xbf16>
    %c8 = arith.constant 8 : index
    %c0_19 = arith.constant 0 : index
    %23 = vector.load %arg7[%c8, %c0_19] : memref<72x288xbf16, #tpu.memory_space<vmem>>, vector<8x288xbf16>
    tpu.vector_store %arg7[%c8, %c0_19], %22 {strides = array<i32>} : memref<72x288xbf16, #tpu.memory_space<vmem>>, vector<8x288xbf16>,
    %c0_20 = arith.constant 0 : index
    %c2 = arith.constant 2 : index
    %24 = vector.load %arg6[%c0_20, %c2] : memref<8x342xbf16, #tpu.memory_space<vmem>>, vector<8x288xbf16>
    %c16 = arith.constant 16 : index
    %c0_21 = arith.constant 0 : index
    %25 = vector.load %arg7[%c16, %c0_21] : memref<72x288xbf16, #tpu.memory_space<vmem>>, vector<8x288xbf16>
    tpu.vector_store %arg7[%c16, %c0_21], %24 {strides = array<i32>} : memref<72x288xbf16, #tpu.memory_space<vmem>>, vector<8x288xbf16>,
    %c0_22 = arith.constant 0 : index
    %c18 = arith.constant 18 : index
    %26 = vector.load %arg6[%c0_22, %c18] : memref<8x342xbf16, #tpu.memory_space<vmem>>, vector<8x288xbf16>
    %c24 = arith.constant 24 : index
    %c0_23 = arith.constant 0 : index
    %27 = vector.load %arg7[%c24, %c0_23] : memref<72x288xbf16, #tpu.memory_space<vmem>>, vector<8x288xbf16>
    tpu.vector_store %arg7[%c24, %c0_23], %26 {strides = array<i32>} : memref<72x288xbf16, #tpu.memory_space<vmem>>, vector<8x288xbf16>,
    %c0_24 = arith.constant 0 : index
    %c19_25 = arith.constant 19 : index
    %28 = vector.load %arg6[%c0_24, %c19_25] : memref<8x342xbf16, #tpu.memory_space<vmem>>, vector<8x288xbf16>
    %c32 = arith.constant 32 : index
    %c0_26 = arith.constant 0 : index
    %29 = vector.load %arg7[%c32, %c0_26] : memref<72x288xbf16, #tpu.memory_space<vmem>>, vector<8x288xbf16>
    tpu.vector_store %arg7[%c32, %c0_26], %28 {strides = array<i32>} : memref<72x288xbf16, #tpu.memory_space<vmem>>, vector<8x288xbf16>,
    %c0_27 = arith.constant 0 : index
    %c20 = arith.constant 20 : index
    %30 = vector.load %arg6[%c0_27, %c20] : memref<8x342xbf16, #tpu.memory_space<vmem>>, vector<8x288xbf16>
    %c40 = arith.constant 40 : index
    %c0_28 = arith.constant 0 : index
    %31 = vector.load %arg7[%c40, %c0_28] : memref<72x288xbf16, #tpu.memory_space<vmem>>, vector<8x288xbf16>
    tpu.vector_store %arg7[%c40, %c0_28], %30 {strides = array<i32>} : memref<72x288xbf16, #tpu.memory_space<vmem>>, vector<8x288xbf16>,
    %c0_29 = arith.constant 0 : index
    %c36 = arith.constant 36 : index
    %32 = vector.load %arg6[%c0_29, %c36] : memref<8x342xbf16, #tpu.memory_space<vmem>>, vector<8x288xbf16>
    %c48 = arith.constant 48 : index
    %c0_30 = arith.constant 0 : index
    %33 = vector.load %arg7[%c48, %c0_30] : memref<72x288xbf16, #tpu.memory_space<vmem>>, vector<8x288xbf16>
    tpu.vector_store %arg7[%c48, %c0_30], %32 {strides = array<i32>} : memref<72x288xbf16, #tpu.memory_space<vmem>>, vector<8x288xbf16>,
    %c0_31 = arith.constant 0 : index
    %c37 = arith.constant 37 : index
    %34 = vector.load %arg6[%c0_31, %c37] : memref<8x342xbf16, #tpu.memory_space<vmem>>, vector<8x288xbf16>
    %c56 = arith.constant 56 : index
    %c0_32 = arith.constant 0 : index
    %35 = vector.load %arg7[%c56, %c0_32] : memref<72x288xbf16, #tpu.memory_space<vmem>>, vector<8x288xbf16>
    tpu.vector_store %arg7[%c56, %c0_32], %34 {strides = array<i32>} : memref<72x288xbf16, #tpu.memory_space<vmem>>, vector<8x288xbf16>,
    %c0_33 = arith.constant 0 : index
    %c38 = arith.constant 38 : index
    %36 = vector.load %arg6[%c0_33, %c38] : memref<8x342xbf16, #tpu.memory_space<vmem>>, vector<8x288xbf16>
    %c64 = arith.constant 64 : index
    %c0_34 = arith.constant 0 : index
    %37 = vector.load %arg7[%c64, %c0_34] : memref<72x288xbf16, #tpu.memory_space<vmem>>, vector<8x288xbf16>
    tpu.vector_store %arg7[%c64, %c0_34], %36 {strides = array<i32>} : memref<72x288xbf16, #tpu.memory_space<vmem>>, vector<8x288xbf16>,
    %c0_35 = arith.constant 0 : index
    %c0_36 = arith.constant 0 : index
    %38 = vector.load %arg3[%c0_35, %c0_36] : memref<8x72xbf16, #tpu.memory_space<vmem>>, vector<8x72xbf16>
    %c0_37 = arith.constant 0 : index
    %c0_38 = arith.constant 0 : index
    %39 = vector.load %arg7[%c0_37, %c0_38] : memref<72x288xbf16, #tpu.memory_space<vmem>>, vector<72x288xbf16>
    %cst_39 = arith.constant dense<0.000000e+00> : vector<8x288xf32>
    %40 = tpu.matmul %38, %39, %cst_39 {dimension_numbers = #tpu.dot_dimension_numbers<[1], [0], [0], [1], [0, 0, 1, 1], [], []>} : vector<8x72xbf16>, vector<72x288xbf16>, vector<8x288xf32> -> vector<8x288xf32>
    %c0_40 = arith.constant 0 : index
    %c0_41 = arith.constant 0 : index
    %c0_42 = arith.constant 0 : index
    %41 = vector.load %arg5[%c0_40, %c0_41, %c0_42] : memref<1x8x288xf32, #tpu.memory_space<vmem>>, vector<1x8x288xf32>
    %42 = vector.shape_cast %41 : vector<1x8x288xf32> to vector<8x288xf32>
    %43 = vector.shape_cast %40 : vector<8x288xf32> to vector<1x8x288xf32>
    tpu.vector_store %arg5[%c0_40, %c0_41, %c0_42], %43 {strides = array<i32>} : memref<1x8x288xf32, #tpu.memory_space<vmem>>, vector<1x8x288xf32>,
    return
  }
  func.func @transform_0(%arg0: i32) -> (i32, i32, i32) {
    %c0_i32 = arith.constant 0 : i32
    %c0_i32_0 = arith.constant 0 : i32
    %c0_i32_1 = arith.constant 0 : i32
    return %arg0, %c0_i32, %c0_i32_0 : i32, i32, i32
  }
  func.func @transform_1(%arg0: i32) -> (i32, i32) {
    %c0_i32 = arith.constant 0 : i32
    %c0_i32_0 = arith.constant 0 : i32
    %c0_i32_1 = arith.constant 0 : i32
    return %c0_i32, %c0_i32_0 : i32, i32
  }
  func.func @transform_2(%arg0: i32) -> (i32, i32) {
    %c0_i32 = arith.constant 0 : i32
    %c0_i32_0 = arith.constant 0 : i32
    %c0_i32_1 = arith.constant 0 : i32
    return %c0_i32, %c0_i32_0 : i32, i32
  }
  func.func @transform_3(%arg0: i32) -> (i32, i32) {
    %c0_i32 = arith.constant 0 : i32
    %c0_i32_0 = arith.constant 0 : i32
    %c0_i32_1 = arith.constant 0 : i32
    return %c0_i32, %c0_i32_0 : i32, i32
  }
  func.func @transform_4(%arg0: i32) -> (i32, i32, i32) {
    %c0_i32 = arith.constant 0 : i32
    %c0_i32_0 = arith.constant 0 : i32
    %c0_i32_1 = arith.constant 0 : i32
    return %arg0, %c0_i32, %c0_i32_0 : i32, i32, i32
  }
}

module attributes {stable_mosaic.version = 11 : i64} {
  func.func @conv1_stats_kernel(%arg0: i32, %arg1: memref<1x4x342xbf16, #tpu.memory_space<vmem>>, %arg2: memref<8x36xbf16, #tpu.memory_space<vmem>>, %arg3: memref<1x288xf32, #tpu.memory_space<vmem>>, %arg4: memref<1x8x288xbf16, #tpu.memory_space<vmem>>, %arg5: memref<1x8x2xf32, #tpu.memory_space<vmem>>, %arg6: memref<36x288xbf16, #tpu.memory_space<vmem>>) attributes {dimension_semantics = [#tpu.dimension_semantics<parallel>], iteration_bounds = array<i64: 2>, scalar_prefetch = 0 : i64, scratch_operands = 1 : i64, tpu.core_type = #tpu.core_type<tc>, window_params = [{transform_indices = @transform_0, window_bounds = array<i64: 1, 4, 342>}, {pipeline_mode = #tpu.pipeline_mode<synchronous>, transform_indices = @transform_1, window_bounds = array<i64: 8, 36>}, {pipeline_mode = #tpu.pipeline_mode<synchronous>, transform_indices = @transform_2, window_bounds = array<i64: 1, 288>}, {transform_indices = @transform_3, window_bounds = array<i64: 1, 8, 288>}, {transform_indices = @transform_4, window_bounds = array<i64: 1, 8, 2>}]} {
    %c0 = arith.constant 0 : index
    %c0_0 = arith.constant 0 : index
    %c0_1 = arith.constant 0 : index
    %0 = vector.load %arg1[%c0, %c0_0, %c0_1] : memref<1x4x342xbf16, #tpu.memory_space<vmem>>, vector<1x4x288xbf16>
    %1 = vector.shape_cast %0 : vector<1x4x288xbf16> to vector<4x288xbf16>
    %c0_2 = arith.constant 0 : index
    %c0_3 = arith.constant 0 : index
    %2 = vector.load %arg6[%c0_2, %c0_3] : memref<36x288xbf16, #tpu.memory_space<vmem>>, vector<4x288xbf16>
    tpu.vector_store %arg6[%c0_2, %c0_3], %1 {strides = array<i32>} : memref<36x288xbf16, #tpu.memory_space<vmem>>, vector<4x288xbf16>,
    %c0_4 = arith.constant 0 : index
    %c0_5 = arith.constant 0 : index
    %c1 = arith.constant 1 : index
    %3 = vector.load %arg1[%c0_4, %c0_5, %c1] : memref<1x4x342xbf16, #tpu.memory_space<vmem>>, vector<1x4x288xbf16>
    %4 = vector.shape_cast %3 : vector<1x4x288xbf16> to vector<4x288xbf16>
    %c4 = arith.constant 4 : index
    %c0_6 = arith.constant 0 : index
    %5 = vector.load %arg6[%c4, %c0_6] : memref<36x288xbf16, #tpu.memory_space<vmem>>, vector<4x288xbf16>
    tpu.vector_store %arg6[%c4, %c0_6], %4 {strides = array<i32>} : memref<36x288xbf16, #tpu.memory_space<vmem>>, vector<4x288xbf16>,
    %c0_7 = arith.constant 0 : index
    %c0_8 = arith.constant 0 : index
    %c2 = arith.constant 2 : index
    %6 = vector.load %arg1[%c0_7, %c0_8, %c2] : memref<1x4x342xbf16, #tpu.memory_space<vmem>>, vector<1x4x288xbf16>
    %7 = vector.shape_cast %6 : vector<1x4x288xbf16> to vector<4x288xbf16>
    %c8 = arith.constant 8 : index
    %c0_9 = arith.constant 0 : index
    %8 = vector.load %arg6[%c8, %c0_9] : memref<36x288xbf16, #tpu.memory_space<vmem>>, vector<4x288xbf16>
    tpu.vector_store %arg6[%c8, %c0_9], %7 {strides = array<i32>} : memref<36x288xbf16, #tpu.memory_space<vmem>>, vector<4x288xbf16>,
    %c0_10 = arith.constant 0 : index
    %c0_11 = arith.constant 0 : index
    %c18 = arith.constant 18 : index
    %9 = vector.load %arg1[%c0_10, %c0_11, %c18] : memref<1x4x342xbf16, #tpu.memory_space<vmem>>, vector<1x4x288xbf16>
    %10 = vector.shape_cast %9 : vector<1x4x288xbf16> to vector<4x288xbf16>
    %c12 = arith.constant 12 : index
    %c0_12 = arith.constant 0 : index
    %11 = vector.load %arg6[%c12, %c0_12] : memref<36x288xbf16, #tpu.memory_space<vmem>>, vector<4x288xbf16>
    tpu.vector_store %arg6[%c12, %c0_12], %10 {strides = array<i32>} : memref<36x288xbf16, #tpu.memory_space<vmem>>, vector<4x288xbf16>,
    %c0_13 = arith.constant 0 : index
    %c0_14 = arith.constant 0 : index
    %c19 = arith.constant 19 : index
    %12 = vector.load %arg1[%c0_13, %c0_14, %c19] : memref<1x4x342xbf16, #tpu.memory_space<vmem>>, vector<1x4x288xbf16>
    %13 = vector.shape_cast %12 : vector<1x4x288xbf16> to vector<4x288xbf16>
    %c16 = arith.constant 16 : index
    %c0_15 = arith.constant 0 : index
    %14 = vector.load %arg6[%c16, %c0_15] : memref<36x288xbf16, #tpu.memory_space<vmem>>, vector<4x288xbf16>
    tpu.vector_store %arg6[%c16, %c0_15], %13 {strides = array<i32>} : memref<36x288xbf16, #tpu.memory_space<vmem>>, vector<4x288xbf16>,
    %c0_16 = arith.constant 0 : index
    %c0_17 = arith.constant 0 : index
    %c20 = arith.constant 20 : index
    %15 = vector.load %arg1[%c0_16, %c0_17, %c20] : memref<1x4x342xbf16, #tpu.memory_space<vmem>>, vector<1x4x288xbf16>
    %16 = vector.shape_cast %15 : vector<1x4x288xbf16> to vector<4x288xbf16>
    %c20_18 = arith.constant 20 : index
    %c0_19 = arith.constant 0 : index
    %17 = vector.load %arg6[%c20_18, %c0_19] : memref<36x288xbf16, #tpu.memory_space<vmem>>, vector<4x288xbf16>
    tpu.vector_store %arg6[%c20_18, %c0_19], %16 {strides = array<i32>} : memref<36x288xbf16, #tpu.memory_space<vmem>>, vector<4x288xbf16>,
    %c0_20 = arith.constant 0 : index
    %c0_21 = arith.constant 0 : index
    %c36 = arith.constant 36 : index
    %18 = vector.load %arg1[%c0_20, %c0_21, %c36] : memref<1x4x342xbf16, #tpu.memory_space<vmem>>, vector<1x4x288xbf16>
    %19 = vector.shape_cast %18 : vector<1x4x288xbf16> to vector<4x288xbf16>
    %c24 = arith.constant 24 : index
    %c0_22 = arith.constant 0 : index
    %20 = vector.load %arg6[%c24, %c0_22] : memref<36x288xbf16, #tpu.memory_space<vmem>>, vector<4x288xbf16>
    tpu.vector_store %arg6[%c24, %c0_22], %19 {strides = array<i32>} : memref<36x288xbf16, #tpu.memory_space<vmem>>, vector<4x288xbf16>,
    %c0_23 = arith.constant 0 : index
    %c0_24 = arith.constant 0 : index
    %c37 = arith.constant 37 : index
    %21 = vector.load %arg1[%c0_23, %c0_24, %c37] : memref<1x4x342xbf16, #tpu.memory_space<vmem>>, vector<1x4x288xbf16>
    %22 = vector.shape_cast %21 : vector<1x4x288xbf16> to vector<4x288xbf16>
    %c28 = arith.constant 28 : index
    %c0_25 = arith.constant 0 : index
    %23 = vector.load %arg6[%c28, %c0_25] : memref<36x288xbf16, #tpu.memory_space<vmem>>, vector<4x288xbf16>
    tpu.vector_store %arg6[%c28, %c0_25], %22 {strides = array<i32>} : memref<36x288xbf16, #tpu.memory_space<vmem>>, vector<4x288xbf16>,
    %c0_26 = arith.constant 0 : index
    %c0_27 = arith.constant 0 : index
    %c38 = arith.constant 38 : index
    %24 = vector.load %arg1[%c0_26, %c0_27, %c38] : memref<1x4x342xbf16, #tpu.memory_space<vmem>>, vector<1x4x288xbf16>
    %25 = vector.shape_cast %24 : vector<1x4x288xbf16> to vector<4x288xbf16>
    %c32 = arith.constant 32 : index
    %c0_28 = arith.constant 0 : index
    %26 = vector.load %arg6[%c32, %c0_28] : memref<36x288xbf16, #tpu.memory_space<vmem>>, vector<4x288xbf16>
    tpu.vector_store %arg6[%c32, %c0_28], %25 {strides = array<i32>} : memref<36x288xbf16, #tpu.memory_space<vmem>>, vector<4x288xbf16>,
    %c0_29 = arith.constant 0 : index
    %c0_30 = arith.constant 0 : index
    %27 = vector.load %arg2[%c0_29, %c0_30] : memref<8x36xbf16, #tpu.memory_space<vmem>>, vector<8x36xbf16>
    %c0_31 = arith.constant 0 : index
    %c0_32 = arith.constant 0 : index
    %28 = vector.load %arg6[%c0_31, %c0_32] : memref<36x288xbf16, #tpu.memory_space<vmem>>, vector<36x288xbf16>
    %cst = arith.constant dense<0.000000e+00> : vector<8x288xf32>
    %29 = tpu.matmul %27, %28, %cst {dimension_numbers = #tpu.dot_dimension_numbers<[1], [0], [0], [1], [0, 0, 1, 1], [], []>} : vector<8x36xbf16>, vector<36x288xbf16>, vector<8x288xf32> -> vector<8x288xf32>
    %30 = arith.truncf %29 : vector<8x288xf32> to vector<8x288xbf16>
    %c0_33 = arith.constant 0 : index
    %c0_34 = arith.constant 0 : index
    %c0_35 = arith.constant 0 : index
    %31 = vector.load %arg4[%c0_33, %c0_34, %c0_35] : memref<1x8x288xbf16, #tpu.memory_space<vmem>>, vector<1x8x288xbf16>
    %32 = vector.shape_cast %31 : vector<1x8x288xbf16> to vector<8x288xbf16>
    %33 = vector.shape_cast %30 : vector<8x288xbf16> to vector<1x8x288xbf16>
    tpu.vector_store %arg4[%c0_33, %c0_34, %c0_35], %33 {strides = array<i32>} : memref<1x8x288xbf16, #tpu.memory_space<vmem>>, vector<1x8x288xbf16>,
    %c0_36 = arith.constant 0 : index
    %c0_37 = arith.constant 0 : index
    %34 = vector.load %arg3[%c0_36, %c0_37] : memref<1x288xf32, #tpu.memory_space<vmem>>, vector<1x288xf32>
    %35 = vector.broadcast %34 : vector<1x288xf32> to vector<8x288xf32>
    %36 = arith.mulf %29, %35 : vector<8x288xf32>
    %cst_38 = arith.constant dense<0.000000e+00> : vector<8xf32>
    %37 = vector.multi_reduction <add>, %36, %cst_38 [1] : vector<8x288xf32> to vector<8xf32>
    %38 = vector.shape_cast %37 : vector<8xf32> to vector<8x1xf32>
    %c0_39 = arith.constant 0 : index
    %c0_40 = arith.constant 0 : index
    %c0_41 = arith.constant 0 : index
    %39 = vector.load %arg5[%c0_39, %c0_40, %c0_41] : memref<1x8x2xf32, #tpu.memory_space<vmem>>, vector<1x8x1xf32>
    %40 = vector.shape_cast %39 : vector<1x8x1xf32> to vector<8x1xf32>
    %41 = vector.shape_cast %38 : vector<8x1xf32> to vector<1x8x1xf32>
    tpu.vector_store %arg5[%c0_39, %c0_40, %c0_41], %41 {strides = array<i32>} : memref<1x8x2xf32, #tpu.memory_space<vmem>>, vector<1x8x1xf32>,
    %42 = arith.mulf %36, %36 : vector<8x288xf32>
    %cst_42 = arith.constant dense<0.000000e+00> : vector<8xf32>
    %43 = vector.multi_reduction <add>, %42, %cst_42 [1] : vector<8x288xf32> to vector<8xf32>
    %44 = vector.shape_cast %43 : vector<8xf32> to vector<8x1xf32>
    %c0_43 = arith.constant 0 : index
    %c0_44 = arith.constant 0 : index
    %c1_45 = arith.constant 1 : index
    %45 = vector.load %arg5[%c0_43, %c0_44, %c1_45] : memref<1x8x2xf32, #tpu.memory_space<vmem>>, vector<1x8x1xf32>
    %46 = vector.shape_cast %45 : vector<1x8x1xf32> to vector<8x1xf32>
    %47 = vector.shape_cast %44 : vector<8x1xf32> to vector<1x8x1xf32>
    tpu.vector_store %arg5[%c0_43, %c0_44, %c1_45], %47 {strides = array<i32>} : memref<1x8x2xf32, #tpu.memory_space<vmem>>, vector<1x8x1xf32>,
    return
  }
  func.func @transform_0(%arg0: i32) -> (i32, i32, i32) {
    %c0_i32 = arith.constant 0 : i32
    %c0_i32_0 = arith.constant 0 : i32
    %c0_i32_1 = arith.constant 0 : i32
    return %arg0, %c0_i32, %c0_i32_0 : i32, i32, i32
  }
  func.func @transform_1(%arg0: i32) -> (i32, i32) {
    %c0_i32 = arith.constant 0 : i32
    %c0_i32_0 = arith.constant 0 : i32
    %c0_i32_1 = arith.constant 0 : i32
    return %c0_i32, %c0_i32_0 : i32, i32
  }
  func.func @transform_2(%arg0: i32) -> (i32, i32) {
    %c0_i32 = arith.constant 0 : i32
    %c0_i32_0 = arith.constant 0 : i32
    %c0_i32_1 = arith.constant 0 : i32
    return %c0_i32, %c0_i32_0 : i32, i32
  }
  func.func @transform_3(%arg0: i32) -> (i32, i32, i32) {
    %c0_i32 = arith.constant 0 : i32
    %c0_i32_0 = arith.constant 0 : i32
    %c0_i32_1 = arith.constant 0 : i32
    return %arg0, %c0_i32, %c0_i32_0 : i32, i32, i32
  }
  func.func @transform_4(%arg0: i32) -> (i32, i32, i32) {
    %c0_i32 = arith.constant 0 : i32
    %c0_i32_0 = arith.constant 0 : i32
    %c0_i32_1 = arith.constant 0 : i32
    return %arg0, %c0_i32, %c0_i32_0 : i32, i32, i32
  }
}

</mosaic_0001>

<llo_original>
// kernel: nhlbi_resunet_input_block.2
$region0: #{nhlbi_resunet_input_block.2}
  #allocation0 [shape = 'u32[]', space=smem, size = 0x4, offset = 0x4, fixed_abs, tag = 'smem constant byte address 0x4 - core index']
  #allocation1 [shape = 'u32[72,128]{1,0:T(1,128)}', space=vmem, size = 0x9000, scoped, tag = 'internal scratch']
  #allocation2 [shape = 'bf16[36,288]{1,0:T(8,128)(2,1)}', space=vmem, size = 0x7800, scoped, tag = 'scratch operand']
  %s0 = inlined_call_operand.vmem [shape: bf16[2,4,342], index: 0, kind: input, shape index: {}]
  %s1 = inlined_call_operand.vmem [shape: bf16[8,36], index: 1, kind: input, shape index: {}]
  %s2 = inlined_call_operand.vmem [shape: f32[1,288], index: 2, kind: input, shape index: {}]
  %s3 = inlined_call_operand.vmem [shape: bf16[2,8,288], index: 3, kind: output, shape index: {0}]
  %s4 = inlined_call_operand.vmem [shape: f32[2,8,2], index: 4, kind: output, shape index: {1}]
  %5 = xla_tuple %s3, %s4
  %s6 = sld [smem:[#allocation0]]
  $region53: #{nhlbi_resunet_input_block.2} parent=0
    _
  %s8 = ssub.s32 1, %s6
  %s9 = scalar_select 0, %s8, %s6
  loop: start=0, step=1, limit=4
  $region2: #{nhlbi_resunet_input_block.2} parent=0 // loop_pre_header
    _
  $region3: #{nhlbi_resunet_input_block.2} parent=0 // loop_header
    %s11 = sphi 0, %s15
    %p12 = scmp.ge.s32.totalorder %s11, 4
    %s21 = sphi 0, %s23
    %s24 = sphi 0, %s21
    %s25 = sphi 0, %s24
    %s41 = sphi 0, %s25
    %s45 = sphi 0, %s45
    %s47 = sphi 0, %s45
    %s48 = sphi 0, %s47
    %s62 = sphi 0, %s48
    %s66 = sphi 0, %s66
    %s68 = sphi 0, %s66
    %s69 = sphi 0, %s68
    %s83 = sphi 0, %s69
    %s89 = sphi 0, %s91
    %s92 = sphi 0, %s89
    %s93 = sphi 0, %s92
    %s109 = sphi 0, %s93
    %s115 = sphi 0, %s117
    %s118 = sphi 0, %s115
    %s119 = sphi 0, %s118
    %s135 = sphi 0, %s119
  $region4: #{nhlbi_resunet_input_block.2} parent=0 // loop_header_branch
    %14 = sbr.rel (%p12) target = $region8
  $region5: #{nhlbi_resunet_input_block.2} parent=0 // loop_body
    %s16 = ssub.s32 %s11, 1
    %s17 = ssub.s32 %s11, 2
    %s18 = sadd.s32 %s11, 1
    %s19 = ssub.s32 %s11, %s18
    %p20 = scmp.eq.s32.totalorder %s19, 0
    %s22 = sadd.s32 %s21, 1
    %s23 = scalar_select %p20, %s21, %s22
    %p26 = pneg %p20
    %p27 = scmp.eq.s32.totalorder %s11, 1
    %p28 = por %p26, %p27
    %p29 = scmp.ne.s32.totalorder %s21, %s24
    %p30 = scmp.eq.s32.totalorder %s11, 0
    %p31 = por %p29, %p30
    %p32 = scmp.ne.s32.totalorder %s21, %s24
    %p33 = scmp.eq.s32.totalorder %s16, 1
    %p34 = por %p32, %p33
    %p35 = scmp.ne.s32.totalorder %s24, %s25
    %p36 = scmp.eq.s32.totalorder %s16, 0
    %p37 = por %p35, %p36
    %p38 = scmp.ne.s32.totalorder %s24, %s25
    %p39 = scmp.eq.s32.totalorder %s17, 1
    %p40 = por %p38, %p39
    %p42 = scmp.ne.s32.totalorder %s25, %s41
    %p43 = scmp.eq.s32.totalorder %s17, 0
    %p44 = por %p42, %p43
    %s46 = sadd.s32 %s45, 1
    %p49 = scmp.eq.s32.totalorder %s11, 1
    %p50 = scmp.ne.s32.totalorder %s45, %s47
    %p51 = scmp.eq.s32.totalorder %s11, 0
    %p52 = por %p50, %p51
    %p53 = scmp.ne.s32.totalorder %s45, %s47
    %p54 = scmp.eq.s32.totalorder %s16, 1
    %p55 = por %p53, %p54
    %p56 = scmp.ne.s32.totalorder %s47, %s48
    %p57 = scmp.eq.s32.totalorder %s16, 0
    %p58 = por %p56, %p57
    %p59 = scmp.ne.s32.totalorder %s47, %s48
    %p60 = scmp.eq.s32.totalorder %s17, 1
    %p61 = por %p59, %p60
    %p63 = scmp.ne.s32.totalorder %s48, %s62
    %p64 = scmp.eq.s32.totalorder %s17, 0
    %p65 = por %p63, %p64
    %s67 = sadd.s32 %s66, 1
    %p70 = scmp.eq.s32.totalorder %s11, 1
    %p71 = scmp.ne.s32.totalorder %s66, %s68
    %p72 = scmp.eq.s32.totalorder %s11, 0
    %p73 = por %p71, %p72
    %p74 = scmp.ne.s32.totalorder %s66, %s68
    %p75 = scmp.eq.s32.totalorder %s16, 1
    %p76 = por %p74, %p75
    %p77 = scmp.ne.s32.totalorder %s68, %s69
    %p78 = scmp.eq.s32.totalorder %s16, 0
    %p79 = por %p77, %p78
    %p80 = scmp.ne.s32.totalorder %s68, %s69
    %p81 = scmp.eq.s32.totalorder %s17, 1
    %p82 = por %p80, %p81
    %p84 = scmp.ne.s32.totalorder %s69, %s83
    %p85 = scmp.eq.s32.totalorder %s17, 0
    %p86 = por %p84, %p85
    %s87 = ssub.s32 %s11, %s18
    %p88 = scmp.eq.s32.totalorder %s87, 0
    %s90 = sadd.s32 %s89, 1
    %s91 = scalar_select %p88, %s89, %s90
    %p94 = pneg %p88
    %p95 = scmp.eq.s32.totalorder %s11, 1
    %p96 = por %p94, %p95
    %p97 = scmp.ne.s32.totalorder %s89, %s92
    %p98 = scmp.eq.s32.totalorder %s11, 0
    %p99 = por %p97, %p98
    %p100 = scmp.ne.s32.totalorder %s89, %s92
    %p101 = scmp.eq.s32.totalorder %s16, 1
    %p102 = por %p100, %p101
    %p103 = scmp.ne.s32.totalorder %s92, %s93
    %p104 = scmp.eq.s32.totalorder %s16, 0
    %p105 = por %p103, %p104
    %p106 = scmp.ne.s32.totalorder %s92, %s93
    %p107 = scmp.eq.s32.totalorder %s17, 1
    %p108 = por %p106, %p107
    %p110 = scmp.ne.s32.totalorder %s93, %s109
    %p111 = scmp.eq.s32.totalorder %s17, 0
    %p112 = por %p110, %p111
    %s113 = ssub.s32 %s11, %s18
    %p114 = scmp.eq.s32.totalorder %s113, 0
    %s116 = sadd.s32 %s115, 1
    %s117 = scalar_select %p114, %s115, %s116
    %p120 = pneg %p114
    %p121 = scmp.eq.s32.totalorder %s11, 1
    %p122 = por %p120, %p121
    %p123 = scmp.ne.s32.totalorder %s115, %s118
    %p124 = scmp.eq.s32.totalorder %s11, 0
    %p125 = por %p123, %p124
    %p126 = scmp.ne.s32.totalorder %s115, %s118
    %p127 = scmp.eq.s32.totalorder %s16, 1
    %p128 = por %p126, %p127
    %p129 = scmp.ne.s32.totalorder %s118, %s119
    %p130 = scmp.eq.s32.totalorder %s16, 0
    %p131 = por %p129, %p130
    %p132 = scmp.ne.s32.totalorder %s118, %s119
    %p133 = scmp.eq.s32.totalorder %s17, 1
    %p134 = por %p132, %p133
    %p136 = scmp.ne.s32.totalorder %s119, %s135
    %p137 = scmp.eq.s32.totalorder %s17, 0
    %p138 = por %p136, %p137
    %p139 = scmp.le.s32.totalorder 1, %s11
    %p140 = scmp.lt.s32.totalorder %s11, 3
    %p141 = pnand %p139, %p140
    %p142 = pneg %p141
    // Predicated region
    $region9: #{nhlbi_resunet_input_block.2} parent=5 // pred_check
      _
    $region10: #{nhlbi_resunet_input_block.2} parent=5 // pred_check_branch
      %144 = sbr.rel (%p141) target = $region12
    $region11: #{nhlbi_resunet_input_block.2} parent=5 // pred_region
      %s145 = ssub.s32 %s11, 1
      // Predicated region
      $region13: #{nhlbi_resunet_input_block.2} parent=11 // pred_check
        %p146 = pneg %p58
      $region14: #{nhlbi_resunet_input_block.2} parent=11 // pred_check_branch
        %148 = sbr.rel (%p146) target = $region16
      $region15: #{nhlbi_resunet_input_block.2} parent=11 // pred_region
        _
      $region16: #{nhlbi_resunet_input_block.2} parent=11 // pred_fallthru
        _
      // Predicated region
      $region17: #{nhlbi_resunet_input_block.2} parent=11 // pred_check
        %p149 = pneg %p79
      $region18: #{nhlbi_resunet_input_block.2} parent=11 // pred_check_branch
        %151 = sbr.rel (%p149) target = $region20
      $region19: #{nhlbi_resunet_input_block.2} parent=11 // pred_region
        _
      $region20: #{nhlbi_resunet_input_block.2} parent=11 // pred_fallthru
        _
    $region12: #{nhlbi_resunet_input_block.2} parent=5 // pred_fallthru
      _
    %p152 = scmp.lt.s32.totalorder %s11, 2
    // Predicated region
    $region21: #{nhlbi_resunet_input_block.2} parent=5 // pred_check
      %p153 = pneg %p152
    $region22: #{nhlbi_resunet_input_block.2} parent=5 // pred_check_branch
      %155 = sbr.rel (%p153) target = $region24
    $region23: #{nhlbi_resunet_input_block.2} parent=5 // pred_region
      // Predicated region
      $region25: #{nhlbi_resunet_input_block.2} parent=23 // pred_check
        %p156 = pneg %p31
      $region26: #{nhlbi_resunet_input_block.2} parent=23 // pred_check_branch
        %158 = sbr.rel (%p156) target = $region28
      $region27: #{nhlbi_resunet_input_block.2} parent=23 // pred_region
        %p159 = scmp.lt.s32.totalorder %s11, 1
        %s160 = scalar_select %p159, %s11, 1
        %s161 = smul.addr %s160, 3
        %s162 = smul.addr %s161, 2
        %s163 = scalar_lea.vmem %s0, %s162
      $region28: #{nhlbi_resunet_input_block.2} parent=23 // pred_fallthru
        _
    $region24: #{nhlbi_resunet_input_block.2} parent=5 // pred_fallthru
      _
    %p164 = scmp.le.s32.totalorder 1, %s11
    %p165 = scmp.lt.s32.totalorder %s11, 3
    %p166 = pnand %p164, %p165
    %p167 = pneg %p166
    // Predicated region
    $region29: #{nhlbi_resunet_input_block.2} parent=5 // pred_check
      _
    $region30: #{nhlbi_resunet_input_block.2} parent=5 // pred_check_branch
      %169 = sbr.rel (%p166) target = $region32
    $region31: #{nhlbi_resunet_input_block.2} parent=5 // pred_region
      %s170 = ssub.s32 %s11, 1
      %p171 = scmp.lt.s32.totalorder %s16, 1
      %s172 = scalar_select %p171, %s16, 1
      %s173 = smul.addr %s172, 3
      %s174 = smul.addr %s173, 2
      %s175 = scalar_lea.vmem %s0, %s174
      %p176 = pneg %p37
      %p177 = pneg %p34
      %p178 = pneg %p58
      %p179 = pneg %p55
      %p180 = pneg %p79
      %p181 = pneg %p76
      %p182 = pneg %p105
      %p183 = pneg %p102
      %p184 = scmp.lt.s32.totalorder %s16, 1
      %s185 = scalar_select %p184, %s16, 1
      %s186 = smul.addr %s185, 3
      %s187 = smul.addr %s186, 4
      %s188 = scalar_lea.vmem %s3, %s187
      %p189 = pneg %p131
      %p190 = pneg %p128
      %p191 = scmp.lt.s32.totalorder %s16, 1
      %s192 = scalar_select %p191, %s16, 1
      %s193 = smul.addr %s192, 8
      %s194 = scalar_lea.vmem %s4, %s193
      %p195 = scmp.lt.s32.totalorder %s16, 1
      %s196 = scalar_select %p195, %s16, 1
      %s197 = smul.addr %s196, 3
      %s198 = smul.addr %s197, 2
      %s199 = scalar_lea.vmem %s0, %s198
      %p200 = scmp.lt.s32.totalorder %s16, 1
      %s201 = scalar_select %p200, %s16, 1
      %s202 = smul.addr %s201, 3
      %s203 = smul.addr %s202, 4
      %s204 = scalar_lea.vmem %s3, %s203
      %p205 = scmp.lt.s32.totalorder %s16, 1
      %s206 = scalar_select %p205, %s16, 1
      %s207 = smul.addr %s206, 8
      %s208 = scalar_lea.vmem %s4, %s207
      %v210 = vld [vmem:[%s199] sm:$0x3f]
      %212 = vst [vmem:[#allocation1] ss:$2 sm:$0xff] %v210
      %v213 = vld.sshfl [vmem:[#allocation1] sm:$0xff pattern:$0x75643120]
      %v214 = vld.sshfl [vmem:[#allocation1 + $0x8] sm:$0xff pattern:$0x75643120]
      %217 = vst [vmem:[#allocation2] sm:$0x33] %v213
      %vm218 = vcmask 254976
      %219 = vst.msk [vmem:[#allocation2 + $0x8] sm:$0x3] %vm218, %v214
      %v220 = vld [vmem:[%s199] sm:$0x3f]
      %s222 = scalar_lea.vmem [#allocation1], 1
      %223 = vst [vmem:[%s222] ss:$2 sm:$0xff] %v220
      %v224 = vld.sshfl [vmem:[#allocation1] sm:$0xff pattern:$0x75643120]
      %v226 = vld.sshfl [vmem:[#allocation1 + $0x8] sm:$0xff pattern:$0x75643120]
      %228 = vrot.lane.b32.xlu0 %v224, 127
      %v229 = vpop.permute.xlu0 %228
      %230 = vrot.lane.b32.xlu0 %v226, 127
      %v231 = vpop.permute.xlu0 %230
      %v232 = vrot.slane %v229, 4
      %v233 = vrot.slane %v231, 4
      %vm234 = vcmask 1043456
      %v235 = vsel %vm234, %v232, %v233
      %vm236 = vcmask 1039360
      %v237 = vsel %vm236, %v229, %v235
      %240 = vst [vmem:[#allocation2] sm:$0xcc] %v237
      %vm241 = vcmask 257026
      %242 = vst.msk [vmem:[#allocation2 + $0x8] sm:$0xc] %vm241, %v231
      %v243 = vld [vmem:[%s199] sm:$0x3f]
      %245 = vst [vmem:[#allocation1] ss:$2 sm:$0xff] %v243
      %v246 = vld.sshfl [vmem:[#allocation1] sm:$0xff pattern:$0x75643120]
      %v248 = vld.sshfl [vmem:[#allocation1 + $0x8] sm:$0xff pattern:$0x75643120]
      %250 = vrot.lane.b32.xlu0 %v246, 126
      %v251 = vpop.permute.xlu0 %250
      %252 = vrot.lane.b32.xlu0 %v248, 126
      %v253 = vpop.permute.xlu0 %252
      %v254 = vrot.slane %v251, 4
      %v255 = vrot.slane %v253, 4
      %v256 = vsel %vm234, %v254, %v255
      %vm257 = vcmask 1031168
      %v258 = vsel %vm257, %v251, %v256
      %261 = vst [vmem:[#allocation2 + $0xc] sm:$0x33] %v258
      %262 = vst.msk [vmem:[#allocation2 + $0x14] sm:$0x3] %vm218, %v253
      %v263 = vld [vmem:[%s199] sm:$0x3f]
      %s265 = scalar_lea.vmem [#allocation1], 1
      %266 = vst [vmem:[%s265] ss:$2 sm:$0xff] %v263
      %v267 = vld.sshfl [vmem:[#allocation1] sm:$0xff pattern:$0x75643120]
      %v269 = vld.sshfl [vmem:[#allocation1 + $0x8] sm:$0xff pattern:$0x75643120]
      %271 = vrot.lane.b32.xlu0 %v267, 110
      %v272 = vpop.permute.xlu0 %271
      %273 = vrot.lane.b32.xlu0 %v269, 110
      %v274 = vpop.permute.xlu0 %273
      %v275 = vrot.slane %v272, 4
      %v276 = vrot.slane %v274, 4
      %v277 = vsel %vm234, %v275, %v276
      %vm278 = vcmask 900096
      %v279 = vsel %vm278, %v272, %v277
      %282 = vst [vmem:[#allocation2 + $0xc] sm:$0xcc] %v279
      %283 = vst.msk [vmem:[#allocation2 + $0x14] sm:$0xc] %vm241, %v274
      %v284 = vld [vmem:[%s199] sm:$0x3f]
      %286 = vst [vmem:[#allocation1] ss:$2 sm:$0xff] %v284
      %v287 = vld.sshfl [vmem:[#allocation1] sm:$0xff pattern:$0x75643120]
      %v289 = vld.sshfl [vmem:[#allocation1 + $0x8] sm:$0xff pattern:$0x75643120]
      %291 = vrot.lane.b32.xlu0 %v287, 109
      %v292 = vpop.permute.xlu0 %291
      %293 = vrot.lane.b32.xlu0 %v289, 109
      %v294 = vpop.permute.xlu0 %293
      %v295 = vrot.slane %v292, 4
      %v296 = vrot.slane %v294, 4
      %v297 = vsel %vm234, %v295, %v296
      %vm298 = vcmask 891904
      %v299 = vsel %vm298, %v292, %v297
      %302 = vst [vmem:[#allocation2 + $0x18] sm:$0x33] %v299
      %303 = vst.msk [vmem:[#allocation2 + $0x20] sm:$0x3] %vm218, %v294
      %v304 = vld [vmem:[%s199] sm:$0x3f]
      %s306 = scalar_lea.vmem [#allocation1], 1
      %307 = vst [vmem:[%s306] ss:$2 sm:$0xff] %v304
      %v308 = vld.sshfl [vmem:[#allocation1] sm:$0xff pattern:$0x75643120]
      %v310 = vld.sshfl [vmem:[#allocation1 + $0x8] sm:$0xff pattern:$0x75643120]
      %312 = vrot.lane.b32.xlu0 %v308, 108
      %v313 = vpop.permute.xlu0 %312
      %314 = vrot.lane.b32.xlu0 %v310, 108
      %v315 = vpop.permute.xlu0 %314
      %v316 = vrot.slane %v313, 4
      %v317 = vrot.slane %v315, 4
      %v318 = vsel %vm234, %v316, %v317
      %vm319 = vcmask 883712
      %v320 = vsel %vm319, %v313, %v318
      %323 = vst [vmem:[#allocation2 + $0x18] sm:$0xcc] %v320
      %324 = vst.msk [vmem:[#allocation2 + $0x20] sm:$0xc] %vm241, %v315
      %v325 = vld [vmem:[%s199] sm:$0x3f]
      %327 = vst [vmem:[#allocation1] ss:$2 sm:$0xff] %v325
      %v328 = vld.sshfl [vmem:[#allocation1] sm:$0xff pattern:$0x75643120]
      %v330 = vld.sshfl [vmem:[#allocation1 + $0x8] sm:$0xff pattern:$0x75643120]
      %332 = vrot.lane.b32.xlu0 %v328, 92
      %v333 = vpop.permute.xlu0 %332
      %334 = vrot.lane.b32.xlu0 %v330, 92
      %v335 = vpop.permute.xlu0 %334
      %v336 = vrot.slane %v333, 4
      %v337 = vrot.slane %v335, 4
      %v338 = vsel %vm234, %v336, %v337
      %vm339 = vcmask 752640
      %v340 = vsel %vm339, %v333, %v338
      %343 = vst [vmem:[#allocation2 + $0x24] sm:$0x33] %v340
      %344 = vst.msk [vmem:[#allocation2 + $0x2c] sm:$0x3] %vm218, %v335
      %v345 = vld [vmem:[%s199] sm:$0x3f]
      %s347 = scalar_lea.vmem [#allocation1], 1
      %348 = vst [vmem:[%s347] ss:$2 sm:$0xff] %v345
      %v349 = vld.sshfl [vmem:[#allocation1] sm:$0xff pattern:$0x75643120]
      %v351 = vld.sshfl [vmem:[#allocation1 + $0x8] sm:$0xff pattern:$0x75643120]
      %353 = vrot.lane.b32.xlu0 %v349, 91
      %v354 = vpop.permute.xlu0 %353
      %355 = vrot.lane.b32.xlu0 %v351, 91
      %v356 = vpop.permute.xlu0 %355
      %v357 = vrot.slane %v354, 4
      %v358 = vrot.slane %v356, 4
      %v359 = vsel %vm234, %v357, %v358
      %vm360 = vcmask 744448
      %v361 = vsel %vm360, %v354, %v359
      %364 = vst [vmem:[#allocation2 + $0x24] sm:$0xcc] %v361
      %365 = vst.msk [vmem:[#allocation2 + $0x2c] sm:$0xc] %vm241, %v356
      %v366 = vld [vmem:[%s199] sm:$0x3f]
      %368 = vst [vmem:[#allocation1] ss:$2 sm:$0xff] %v366
      %v369 = vld.sshfl [vmem:[#allocation1] sm:$0xff pattern:$0x75643120]
      %v371 = vld.sshfl [vmem:[#allocation1 + $0x8] sm:$0xff pattern:$0x75643120]
      %373 = vrot.lane.b32.xlu0 %v369, 90
      %v374 = vpop.permute.xlu0 %373
      %375 = vrot.lane.b32.xlu0 %v371, 90
      %v376 = vpop.permute.xlu0 %375
      %v377 = vrot.slane %v374, 4
      %v378 = vrot.slane %v376, 4
      %v379 = vsel %vm234, %v377, %v378
      %vm380 = vcmask 736256
      %v381 = vsel %vm380, %v374, %v379
      %384 = vst [vmem:[#allocation2 + $0x30] sm:$0x33] %v381
      %385 = vst.msk [vmem:[#allocation2 + $0x38] sm:$0x3] %vm218, %v376
      %v386 = vld [vmem:[%s1] sm:$0xf]
      %v387 = vld [vmem:[#allocation2] sm:$0xff]
      %v388 = vld [vmem:[#allocation2 + $0x8] sm:$0xf]
      %v389 = vld [vmem:[#allocation2 + $0xc] sm:$0xff]
      %v390 = vld [vmem:[#allocation2 + $0x14] sm:$0xf]
      %v391 = vld [vmem:[#allocation2 + $0x18] sm:$0xff]
      %v392 = vld [vmem:[#allocation2 + $0x20] sm:$0xf]
      %v393 = vld [vmem:[#allocation2 + $0x24] sm:$0xff]
      %v394 = vld [vmem:[#allocation2 + $0x2c] sm:$0xf]
      %v395 = vld [vmem:[#allocation2 + $0x30] sm:$0x33]
      %v396 = vld [vmem:[#allocation2 + $0x38] sm:$0x3]
      %v407 = vunpack.c.l.b16 %v387
      %v408 = vunpack.c.h.b16 %v387
      %v409 = vunpack.c.l.b16 %v388
      %v410 = vunpack.c.l.b16 %v389
      %v411 = vunpack.c.h.b16 %v389
      %v412 = vunpack.c.l.b16 %v390
      %v413 = vunpack.c.l.b16 %v391
      %v414 = vunpack.c.h.b16 %v391
      %v415 = vunpack.c.l.b16 %v392
      %v416 = vunpack.c.l.b16 %v393
      %v417 = vunpack.c.h.b16 %v393
      %v418 = vunpack.c.l.b16 %v394
      %v419 = vunpack.c.l.b16 %v395
      %v420 = vunpack.c.h.b16 %v395
      %v421 = vunpack.c.l.b16 %v396
      %v422 = vpack.c.b16 %v410, %v407
      %v423 = vpack.c.b16 %v411, %v408
      %v424 = vpack.c.b16 %v412, %v409
      %v425 = vpack.c.b16 %v416, %v413
      %v426 = vpack.c.b16 %v417, %v414
      %v427 = vpack.c.b16 %v418, %v415
      %v428 = vpack.c.b16 %v419, %v419
      %v429 = vpack.c.b16 %v420, %v420
      %v430 = vpack.c.b16 %v421, %v421
      %vm437 = vcmask 293888
      %v439 = vsel %vm437, %v386, 0
      %vm441 = vcmask 1041408
      %v443 = vsel %vm441, %v428, 0
      %v446 = vsel %vm441, %v429, 0
      %v449 = vsel %vm441, %v430, 0
      %451 = vmatpush.bf16.msra.mxu0 0
      %452 = vmatpush.bf16.msra.mxu0 0
      %453 = vmatpush.bf16.msra.mxu0 0
      %454 = vmatpush.bf16.msra.mxu0 0
      %455 = vmatpush.bf16.msra.mxu0 0
      %456 = vmatpush.bf16.msra.mxu0 %v443
      %457 = vmatpush.bf16.msra.mxu0 %v425
      %458 = vmatpush.bf16.msra.mxu0 %v422
      %459 = vmatmul.bf16.gmra.mxu0 %v439
      %v460 = vpop.f32.mrf.mxu0
      %v461 = vadd.f32 0.0, %v460
      %v462 = vpop.f32.mrf.mxu0
      %463 = vdwg.mxu0
      %464 = vmatpush.bf16.msra.mxu0 0
      %465 = vmatpush.bf16.msra.mxu0 0
      %466 = vmatpush.bf16.msra.mxu0 0
      %467 = vmatpush.bf16.msra.mxu0 0
      %468 = vmatpush.bf16.msra.mxu0 0
      %469 = vmatpush.bf16.msra.mxu0 %v446
      %470 = vmatpush.bf16.msra.mxu0 %v426
      %471 = vmatpush.bf16.msra.mxu0 %v423
      %472 = vmatmul.bf16.gmra.mxu0 %v439
      %v473 = vpop.f32.mrf.mxu0
      %v474 = vadd.f32 0.0, %v473
      %v475 = vpop.f32.mrf.mxu0
      %476 = vdwg.mxu0
      %477 = vmatpush.bf16.msra.mxu0 0
      %478 = vmatpush.bf16.msra.mxu0 0
      %479 = vmatpush.bf16.msra.mxu0 0
      %480 = vmatpush.bf16.msra.mxu0 0
      %481 = vmatpush.bf16.msra.mxu0 0
      %482 = vmatpush.bf16.msra.mxu0 %v449
      %483 = vmatpush.bf16.msra.mxu0 %v427
      %484 = vmatpush.bf16.msra.mxu0 %v424
      %485 = vmatmul.bf16.gmra.mxu0 %v439
      %v486 = vpop.f32.mrf.mxu0
      %v487 = vadd.f32 0.0, %v486
      %v488 = vpop.f32.mrf.mxu0
      %489 = vdwg.mxu0
      %v490 = vpack.c.bf16 %v474, %v461
      %v491 = vpack.c.bf16 %v487, %v487
      %492 = vst [vmem:[%s204] sm:$0xff] %v490
      %vm493 = vcmask 257024
      %494 = vst.msk [vmem:[%s204 + $0x8] sm:$0xf] %vm493, %v491
      %v495 = vld [vmem:[%s2] sm:$0x7]
      %v497 = vperm.slane %v495, 0
      %v498 = vperm.slane %v495, 1
      %v499 = vperm.slane %v495, 2
      %v503 = vmul.f32 %v461, %v497
      %v504 = vmul.f32 %v474, %v498
      %v505 = vmul.f32 %v487, %v499
      %v506 = vadd.f32 %v503, %v504
      %vm507 = vcmask 261120
      %v508 = vsel %vm507, %v505, 0.0
      %v509 = vadd.f32 %v506, %v508
      %510 = vadd.xlane.f32.xlu0 %v509
      %v511 = vpop.xlane.xlu0 %510
      %vm512 = vcmask 7168
      %513 = vst.msk [vmem:[%s208] sm:$0xff] %vm512, %v511
      %v514 = vmul.f32 %v503, %v503
      %v515 = vmul.f32 %v504, %v504
      %v516 = vmul.f32 %v505, %v505
      %v517 = vadd.f32 %v514, %v515
      %v518 = vsel %vm507, %v516, 0.0
      %v519 = vadd.f32 %v517, %v518
      %520 = vadd.xlane.f32.xlu0 %v519
      %v521 = vpop.xlane.xlu0 %520
      %vm522 = vcmask 15368
      %523 = vst.msk [vmem:[%s208] sm:$0xff] %vm522, %v521
      %p524 = scmp.lt.s32.totalorder %s16, 1
      %s525 = scalar_select %p524, %s16, 1
      %s526 = smul.addr %s525, 3
      %s527 = smul.addr %s526, 4
      %s528 = scalar_lea.vmem %s3, %s527
      %p529 = scmp.lt.s32.totalorder %s16, 1
      %s530 = scalar_select %p529, %s16, 1
      %s531 = smul.addr %s530, 8
      %s532 = scalar_lea.vmem %s4, %s531
      // Predicated region
      $region33: #{nhlbi_resunet_input_block.2} parent=31 // pred_check
        %p533 = pneg %p102
      $region34: #{nhlbi_resunet_input_block.2} parent=31 // pred_check_branch
        %535 = sbr.rel (%p533) target = $region36
      $region35: #{nhlbi_resunet_input_block.2} parent=31 // pred_region
        _
      $region36: #{nhlbi_resunet_input_block.2} parent=31 // pred_fallthru
        _
      // Predicated region
      $region37: #{nhlbi_resunet_input_block.2} parent=31 // pred_check
        %p536 = pneg %p128
      $region38: #{nhlbi_resunet_input_block.2} parent=31 // pred_check_branch
        %538 = sbr.rel (%p536) target = $region40
      $region39: #{nhlbi_resunet_input_block.2} parent=31 // pred_region
        _
      $region40: #{nhlbi_resunet_input_block.2} parent=31 // pred_fallthru
        _
    $region32: #{nhlbi_resunet_input_block.2} parent=5 // pred_fallthru
      _
    %p539 = scmp.le.s32.totalorder 2, %s11
    // Predicated region
    $region41: #{nhlbi_resunet_input_block.2} parent=5 // pred_check
      %p540 = pneg %p539
    $region42: #{nhlbi_resunet_input_block.2} parent=5 // pred_check_branch
      %542 = sbr.rel (%p540) target = $region44
    $region43: #{nhlbi_resunet_input_block.2} parent=5 // pred_region
      %s543 = ssub.s32 %s11, 2
      // Predicated region
      $region45: #{nhlbi_resunet_input_block.2} parent=43 // pred_check
        %p544 = pneg %p108
      $region46: #{nhlbi_resunet_input_block.2} parent=43 // pred_check_branch
        %546 = sbr.rel (%p544) target = $region48
      $region47: #{nhlbi_resunet_input_block.2} parent=43 // pred_region
        %p547 = scmp.lt.s32.totalorder %s17, 1
        %s548 = scalar_select %p547, %s17, 1
        %s549 = smul.addr %s548, 3
        %s550 = smul.addr %s549, 4
        %s551 = scalar_lea.vmem %s3, %s550
      $region48: #{nhlbi_resunet_input_block.2} parent=43 // pred_fallthru
        _
      // Predicated region
      $region49: #{nhlbi_resunet_input_block.2} parent=43 // pred_check
        %p552 = pneg %p134
      $region50: #{nhlbi_resunet_input_block.2} parent=43 // pred_check_branch
        %554 = sbr.rel (%p552) target = $region52
      $region51: #{nhlbi_resunet_input_block.2} parent=43 // pred_region
        %p555 = scmp.lt.s32.totalorder %s17, 1
        %s556 = scalar_select %p555, %s17, 1
        %s557 = smul.addr %s556, 8
        %s558 = scalar_lea.vmem %s4, %s557
      $region52: #{nhlbi_resunet_input_block.2} parent=43 // pred_fallthru
        _
    $region44: #{nhlbi_resunet_input_block.2} parent=5 // pred_fallthru
      _
  $region6: #{nhlbi_resunet_input_block.2} parent=0 // loop_footer
    %s15 = sadd.s32 1, %s11
  $region7: #{nhlbi_resunet_input_block.2} parent=0 // loop_footer_branch
    %10 = sbr.rel target = $region3
  $region8: #{nhlbi_resunet_input_block.2} parent=0 // loop_exit
    _

// kernel: nhlbi_resunet_input_block.3
$region0: #{nhlbi_resunet_input_block.3}
  #allocation0 [shape = 'u32[]', space=smem, size = 0x4, offset = 0x4, fixed_abs, tag = 'smem constant byte address 0x4 - core index']
  #allocation1 [shape = 'u32[72,128]{1,0:T(1,128)}', space=vmem, size = 0x9000, scoped, tag = 'internal scratch']
  #allocation2 [shape = 'bf16[8,342]{1,0:T(8,128)(2,1)}', space=vmem, size = 0x1800, scoped, tag = 'scratch operand']
  #allocation3 [shape = 'bf16[72,288]{1,0:T(8,128)(2,1)}', space=vmem, size = 0xd800, scoped, tag = 'scratch operand']
  %s0 = inlined_call_operand.vmem [shape: bf16[2,8,288], index: 0, kind: input, shape index: {}]
  %s1 = inlined_call_operand.vmem [shape: f32[8,2], index: 1, kind: input, shape index: {}]
  %s2 = inlined_call_operand.vmem [shape: bf16[8,72], index: 2, kind: input, shape index: {}]
  %s3 = inlined_call_operand.vmem [shape: f32[1,288], index: 3, kind: input, shape index: {}]
  %s4 = inlined_call_operand.vmem [shape: f32[2,8,288], index: 4, kind: output, shape index: {}]
  %s5 = sld [smem:[#allocation0]]
  $region49: #{nhlbi_resunet_input_block.3} parent=0
    _
  %s7 = ssub.s32 1, %s5
  %s8 = scalar_select 0, %s7, %s5
  loop: start=0, step=1, limit=4
  $region2: #{nhlbi_resunet_input_block.3} parent=0 // loop_pre_header
    _
  $region3: #{nhlbi_resunet_input_block.3} parent=0 // loop_header
    %s10 = sphi 0, %s14
    %p11 = scmp.ge.s32.totalorder %s10, 4
    %s20 = sphi 0, %s22
    %s23 = sphi 0, %s20
    %s24 = sphi 0, %s23
    %s40 = sphi 0, %s24
    %s44 = sphi 0, %s44
    %s46 = sphi 0, %s44
    %s47 = sphi 0, %s46
    %s61 = sphi 0, %s47
    %s65 = sphi 0, %s65
    %s67 = sphi 0, %s65
    %s68 = sphi 0, %s67
    %s82 = sphi 0, %s68
    %s86 = sphi 0, %s86
    %s88 = sphi 0, %s86
    %s89 = sphi 0, %s88
    %s103 = sphi 0, %s89
    %s109 = sphi 0, %s111
    %s112 = sphi 0, %s109
    %s113 = sphi 0, %s112
    %s129 = sphi 0, %s113
  $region4: #{nhlbi_resunet_input_block.3} parent=0 // loop_header_branch
    %13 = sbr.rel (%p11) target = $region8
  $region5: #{nhlbi_resunet_input_block.3} parent=0 // loop_body
    %s15 = ssub.s32 %s10, 1
    %s16 = ssub.s32 %s10, 2
    %s17 = sadd.s32 %s10, 1
    %s18 = ssub.s32 %s10, %s17
    %p19 = scmp.eq.s32.totalorder %s18, 0
    %s21 = sadd.s32 %s20, 1
    %s22 = scalar_select %p19, %s20, %s21
    %p25 = pneg %p19
    %p26 = scmp.eq.s32.totalorder %s10, 1
    %p27 = por %p25, %p26
    %p28 = scmp.ne.s32.totalorder %s20, %s23
    %p29 = scmp.eq.s32.totalorder %s10, 0
    %p30 = por %p28, %p29
    %p31 = scmp.ne.s32.totalorder %s20, %s23
    %p32 = scmp.eq.s32.totalorder %s15, 1
    %p33 = por %p31, %p32
    %p34 = scmp.ne.s32.totalorder %s23, %s24
    %p35 = scmp.eq.s32.totalorder %s15, 0
    %p36 = por %p34, %p35
    %p37 = scmp.ne.s32.totalorder %s23, %s24
    %p38 = scmp.eq.s32.totalorder %s16, 1
    %p39 = por %p37, %p38
    %p41 = scmp.ne.s32.totalorder %s24, %s40
    %p42 = scmp.eq.s32.totalorder %s16, 0
    %p43 = por %p41, %p42
    %s45 = sadd.s32 %s44, 1
    %p48 = scmp.eq.s32.totalorder %s10, 1
    %p49 = scmp.ne.s32.totalorder %s44, %s46
    %p50 = scmp.eq.s32.totalorder %s10, 0
    %p51 = por %p49, %p50
    %p52 = scmp.ne.s32.totalorder %s44, %s46
    %p53 = scmp.eq.s32.totalorder %s15, 1
    %p54 = por %p52, %p53
    %p55 = scmp.ne.s32.totalorder %s46, %s47
    %p56 = scmp.eq.s32.totalorder %s15, 0
    %p57 = por %p55, %p56
    %p58 = scmp.ne.s32.totalorder %s46, %s47
    %p59 = scmp.eq.s32.totalorder %s16, 1
    %p60 = por %p58, %p59
    %p62 = scmp.ne.s32.totalorder %s47, %s61
    %p63 = scmp.eq.s32.totalorder %s16, 0
    %p64 = por %p62, %p63
    %s66 = sadd.s32 %s65, 1
    %p69 = scmp.eq.s32.totalorder %s10, 1
    %p70 = scmp.ne.s32.totalorder %s65, %s67
    %p71 = scmp.eq.s32.totalorder %s10, 0
    %p72 = por %p70, %p71
    %p73 = scmp.ne.s32.totalorder %s65, %s67
    %p74 = scmp.eq.s32.totalorder %s15, 1
    %p75 = por %p73, %p74
    %p76 = scmp.ne.s32.totalorder %s67, %s68
    %p77 = scmp.eq.s32.totalorder %s15, 0
    %p78 = por %p76, %p77
    %p79 = scmp.ne.s32.totalorder %s67, %s68
    %p80 = scmp.eq.s32.totalorder %s16, 1
    %p81 = por %p79, %p80
    %p83 = scmp.ne.s32.totalorder %s68, %s82
    %p84 = scmp.eq.s32.totalorder %s16, 0
    %p85 = por %p83, %p84
    %s87 = sadd.s32 %s86, 1
    %p90 = scmp.eq.s32.totalorder %s10, 1
    %p91 = scmp.ne.s32.totalorder %s86, %s88
    %p92 = scmp.eq.s32.totalorder %s10, 0
    %p93 = por %p91, %p92
    %p94 = scmp.ne.s32.totalorder %s86, %s88
    %p95 = scmp.eq.s32.totalorder %s15, 1
    %p96 = por %p94, %p95
    %p97 = scmp.ne.s32.totalorder %s88, %s89
    %p98 = scmp.eq.s32.totalorder %s15, 0
    %p99 = por %p97, %p98
    %p100 = scmp.ne.s32.totalorder %s88, %s89
    %p101 = scmp.eq.s32.totalorder %s16, 1
    %p102 = por %p100, %p101
    %p104 = scmp.ne.s32.totalorder %s89, %s103
    %p105 = scmp.eq.s32.totalorder %s16, 0
    %p106 = por %p104, %p105
    %s107 = ssub.s32 %s10, %s17
    %p108 = scmp.eq.s32.totalorder %s107, 0
    %s110 = sadd.s32 %s109, 1
    %s111 = scalar_select %p108, %s109, %s110
    %p114 = pneg %p108
    %p115 = scmp.eq.s32.totalorder %s10, 1
    %p116 = por %p114, %p115
    %p117 = scmp.ne.s32.totalorder %s109, %s112
    %p118 = scmp.eq.s32.totalorder %s10, 0
    %p119 = por %p117, %p118
    %p120 = scmp.ne.s32.totalorder %s109, %s112
    %p121 = scmp.eq.s32.totalorder %s15, 1
    %p122 = por %p120, %p121
    %p123 = scmp.ne.s32.totalorder %s112, %s113
    %p124 = scmp.eq.s32.totalorder %s15, 0
    %p125 = por %p123, %p124
    %p126 = scmp.ne.s32.totalorder %s112, %s113
    %p127 = scmp.eq.s32.totalorder %s16, 1
    %p128 = por %p126, %p127
    %p130 = scmp.ne.s32.totalorder %s113, %s129
    %p131 = scmp.eq.s32.totalorder %s16, 0
    %p132 = por %p130, %p131
    %p133 = scmp.le.s32.totalorder 1, %s10
    %p134 = scmp.lt.s32.totalorder %s10, 3
    %p135 = pnand %p133, %p134
    %p136 = pneg %p135
    // Predicated region
    $region9: #{nhlbi_resunet_input_block.3} parent=5 // pred_check
      _
    $region10: #{nhlbi_resunet_input_block.3} parent=5 // pred_check_branch
      %138 = sbr.rel (%p135) target = $region12
    $region11: #{nhlbi_resunet_input_block.3} parent=5 // pred_region
      %s139 = ssub.s32 %s10, 1
      // Predicated region
      $region13: #{nhlbi_resunet_input_block.3} parent=11 // pred_check
        %p140 = pneg %p57
      $region14: #{nhlbi_resunet_input_block.3} parent=11 // pred_check_branch
        %142 = sbr.rel (%p140) target = $region16
      $region15: #{nhlbi_resunet_input_block.3} parent=11 // pred_region
        _
      $region16: #{nhlbi_resunet_input_block.3} parent=11 // pred_fallthru
        _
      // Predicated region
      $region17: #{nhlbi_resunet_input_block.3} parent=11 // pred_check
        %p143 = pneg %p78
      $region18: #{nhlbi_resunet_input_block.3} parent=11 // pred_check_branch
        %145 = sbr.rel (%p143) target = $region20
      $region19: #{nhlbi_resunet_input_block.3} parent=11 // pred_region
        _
      $region20: #{nhlbi_resunet_input_block.3} parent=11 // pred_fallthru
        _
      // Predicated region
      $region21: #{nhlbi_resunet_input_block.3} parent=11 // pred_check
        %p146 = pneg %p99
      $region22: #{nhlbi_resunet_input_block.3} parent=11 // pred_check_branch
        %148 = sbr.rel (%p146) target = $region24
      $region23: #{nhlbi_resunet_input_block.3} parent=11 // pred_region
        _
      $region24: #{nhlbi_resunet_input_block.3} parent=11 // pred_fallthru
        _
    $region12: #{nhlbi_resunet_input_block.3} parent=5 // pred_fallthru
      _
    %p149 = scmp.lt.s32.totalorder %s10, 2
    // Predicated region
    $region25: #{nhlbi_resunet_input_block.3} parent=5 // pred_check
      %p150 = pneg %p149
    $region26: #{nhlbi_resunet_input_block.3} parent=5 // pred_check_branch
      %152 = sbr.rel (%p150) target = $region28
    $region27: #{nhlbi_resunet_input_block.3} parent=5 // pred_region
      // Predicated region
      $region29: #{nhlbi_resunet_input_block.3} parent=27 // pred_check
        %p153 = pneg %p30
      $region30: #{nhlbi_resunet_input_block.3} parent=27 // pred_check_branch
        %155 = sbr.rel (%p153) target = $region32
      $region31: #{nhlbi_resunet_input_block.3} parent=27 // pred_region
        %p156 = scmp.lt.s32.totalorder %s10, 1
        %s157 = scalar_select %p156, %s10, 1
        %s158 = smul.addr %s157, 3
        %s159 = smul.addr %s158, 4
        %s160 = scalar_lea.vmem %s0, %s159
      $region32: #{nhlbi_resunet_input_block.3} parent=27 // pred_fallthru
        _
    $region28: #{nhlbi_resunet_input_block.3} parent=5 // pred_fallthru
      _
    %p161 = scmp.le.s32.totalorder 1, %s10
    %p162 = scmp.lt.s32.totalorder %s10, 3
    %p163 = pnand %p161, %p162
    %p164 = pneg %p163
    // Predicated region
    $region33: #{nhlbi_resunet_input_block.3} parent=5 // pred_check
      _
    $region34: #{nhlbi_resunet_input_block.3} parent=5 // pred_check_branch
      %166 = sbr.rel (%p163) target = $region36
    $region35: #{nhlbi_resunet_input_block.3} parent=5 // pred_region
      %s167 = ssub.s32 %s10, 1
      %p168 = scmp.lt.s32.totalorder %s15, 1
      %s169 = scalar_select %p168, %s15, 1
      %s170 = smul.addr %s169, 3
      %s171 = smul.addr %s170, 4
      %s172 = scalar_lea.vmem %s0, %s171
      %p173 = pneg %p36
      %p174 = pneg %p33
      %p175 = pneg %p57
      %p176 = pneg %p54
      %p177 = pneg %p78
      %p178 = pneg %p75
      %p179 = pneg %p99
      %p180 = pneg %p96
      %p181 = pneg %p125
      %p182 = pneg %p122
      %p183 = scmp.lt.s32.totalorder %s15, 1
      %s184 = scalar_select %p183, %s15, 1
      %s185 = smul.addr %s184, 3
      %s186 = smul.addr %s185, 8
      %s187 = scalar_lea.vmem %s4, %s186
      %p188 = scmp.lt.s32.totalorder %s15, 1
      %s189 = scalar_select %p188, %s15, 1
      %s190 = smul.addr %s189, 3
      %s191 = smul.addr %s190, 4
      %s192 = scalar_lea.vmem %s0, %s191
      %p193 = scmp.lt.s32.totalorder %s15, 1
      %s194 = scalar_select %p193, %s15, 1
      %s195 = smul.addr %s194, 3
      %s196 = smul.addr %s195, 8
      %s197 = scalar_lea.vmem %s4, %s196
      %v199 = vld [vmem:[%s1] sm:$0xff]
      %v200 = vld [vmem:[%s192] sm:$0xff]
      %v201 = vld [vmem:[%s192 + $0x8] sm:$0xf]
      %v202 = vunpack.c.l.bf16 %v200
      %v203 = vunpack.c.h.bf16 %v200
      %v204 = vunpack.c.l.bf16 %v201
      %206 = vset.pattern.permute.xlu0 0
      %207 = vperm.xlu0 %206, %v199
      %v208 = vpop.permute.xlu0 %207
      %v210 = vmul.f32 %v202, %v208
      %v211 = vmul.f32 %v203, %v208
      %v212 = vmul.f32 %v204, %v208
      %213 = vset.pattern.permute.xlu0 1
      %214 = vperm.xlu0 %213, %v199
      %v215 = vpop.permute.xlu0 %214
      %v217 = vadd.f32 %v210, %v215
      %v218 = vadd.f32 %v211, %v215
      %v219 = vadd.f32 %v212, %v215
      %v220 = vmax.f32 %v217, 0.0
      %v221 = vmax.f32 %v218, 0.0
      %v222 = vmax.f32 %v219, 0.0
      %v223 = vld [vmem:[%s3] sm:$0x7]
      %v225 = vperm.slane %v223, 0
      %v226 = vperm.slane %v223, 1
      %v227 = vperm.slane %v223, 2
      %v231 = vmul.f32 %v220, %v225
      %v232 = vmul.f32 %v221, %v226
      %v233 = vmul.f32 %v222, %v227
      %vm234 = vcmask 150528
      %235 = vst.msk [vmem:[#allocation2] sm:$0xf] %vm234, 0
      %v236 = vpack.c.bf16 %v232, %v231
      %v237 = vpack.c.bf16 %v233, %v233
      %240 = vrot.lane.b32.xlu0 %v236, 19
      %v241 = vpop.permute.xlu0 %240
      %242 = vrot.lane.b32.xlu0 %v237, 19
      %v243 = vpop.permute.xlu0 %242
      %v244 = vrot.slane %v241, 4
      %vm245 = vcmask 154624
      %v246 = vsel %vm245, %v244, %v241
      %v247 = vsel %vm245, %v244, %v243
      %vm250 = vcmask 1043608
      %vm251 = vcmask 1047556
      %vm252 = vmor %vm251, %vm250
      %253 = vst.msk [vmem:[#allocation2] sm:$0xff] %vm252, %v246
      %vm254 = vcmask 412672
      %255 = vst.msk [vmem:[#allocation2 + $0x8] sm:$0xf] %vm254, %v247
      %vm256 = vcmask 699800
      %257 = vst.msk [vmem:[#allocation2 + $0x8] sm:$0xf] %vm256, 0
      %v258 = vld [vmem:[#allocation2] sm:$0xff]
      %v259 = vld [vmem:[#allocation2 + $0x8] sm:$0xf]
      %260 = vst [vmem:[#allocation3] sm:$0xff] %v258
      %vm261 = vcmask 257024
      %262 = vst.msk [vmem:[#allocation3 + $0x8] sm:$0xf] %vm261, %v259
      %v263 = vld [vmem:[#allocation2] sm:$0xff]
      %v264 = vld [vmem:[#allocation2 + $0x8] sm:$0xf]
      %267 = vrot.lane.b32.xlu0 %v263, 127
      %v268 = vpop.permute.xlu0 %267
      %269 = vrot.lane.b32.xlu0 %v264, 127
      %v270 = vpop.permute.xlu0 %269
      %v271 = vrot.slane %v268, 4
      %v272 = vrot.slane %v270, 4
      %vm273 = vcmask 1043456
      %v274 = vsel %vm273, %v271, %v272
      %vm275 = vcmask 1039360
      %v276 = vsel %vm275, %v268, %v274
      %279 = vst [vmem:[#allocation3 + $0xc] sm:$0xff] %v276
      %280 = vst.msk [vmem:[#allocation3 + $0x14] sm:$0xf] %vm261, %v270
      %v281 = vld [vmem:[#allocation2] sm:$0xff]
      %v282 = vld [vmem:[#allocation2 + $0x8] sm:$0xf]
      %285 = vrot.lane.b32.xlu0 %v281, 126
      %v286 = vpop.permute.xlu0 %285
      %287 = vrot.lane.b32.xlu0 %v282, 126
      %v288 = vpop.permute.xlu0 %287
      %v289 = vrot.slane %v286, 4
      %v290 = vrot.slane %v288, 4
      %v291 = vsel %vm273, %v289, %v290
      %vm292 = vcmask 1031168
      %v293 = vsel %vm292, %v286, %v291
      %296 = vst [vmem:[#allocation3 + $0x18] sm:$0xff] %v293
      %297 = vst.msk [vmem:[#allocation3 + $0x20] sm:$0xf] %vm261, %v288
      %v298 = vld [vmem:[#allocation2] sm:$0xff]
      %v299 = vld [vmem:[#allocation2 + $0x8] sm:$0xf]
      %302 = vrot.lane.b32.xlu0 %v298, 110
      %v303 = vpop.permute.xlu0 %302
      %304 = vrot.lane.b32.xlu0 %v299, 110
      %v305 = vpop.permute.xlu0 %304
      %v306 = vrot.slane %v303, 4
      %v307 = vrot.slane %v305, 4
      %v308 = vsel %vm273, %v306, %v307
      %vm309 = vcmask 900096
      %v310 = vsel %vm309, %v303, %v308
      %313 = vst [vmem:[#allocation3 + $0x24] sm:$0xff] %v310
      %314 = vst.msk [vmem:[#allocation3 + $0x2c] sm:$0xf] %vm261, %v305
      %v315 = vld [vmem:[#allocation2] sm:$0xff]
      %v316 = vld [vmem:[#allocation2 + $0x8] sm:$0xf]
      %319 = vrot.lane.b32.xlu0 %v315, 109
      %v320 = vpop.permute.xlu0 %319
      %321 = vrot.lane.b32.xlu0 %v316, 109
      %v322 = vpop.permute.xlu0 %321
      %v323 = vrot.slane %v320, 4
      %v324 = vrot.slane %v322, 4
      %v325 = vsel %vm273, %v323, %v324
      %vm326 = vcmask 891904
      %v327 = vsel %vm326, %v320, %v325
      %330 = vst [vmem:[#allocation3 + $0x30] sm:$0xff] %v327
      %331 = vst.msk [vmem:[#allocation3 + $0x38] sm:$0xf] %vm261, %v322
      %v332 = vld [vmem:[#allocation2] sm:$0xff]
      %v333 = vld [vmem:[#allocation2 + $0x8] sm:$0xf]
      %336 = vrot.lane.b32.xlu0 %v332, 108
      %v337 = vpop.permute.xlu0 %336
      %338 = vrot.lane.b32.xlu0 %v333, 108
      %v339 = vpop.permute.xlu0 %338
      %v340 = vrot.slane %v337, 4
      %v341 = vrot.slane %v339, 4
      %v342 = vsel %vm273, %v340, %v341
      %vm343 = vcmask 883712
      %v344 = vsel %vm343, %v337, %v342
      %347 = vst [vmem:[#allocation3 + $0x3c] sm:$0xff] %v344
      %348 = vst.msk [vmem:[#allocation3 + $0x44] sm:$0xf] %vm261, %v339
      %v349 = vld [vmem:[#allocation2] sm:$0xff]
      %v350 = vld [vmem:[#allocation2 + $0x8] sm:$0xf]
      %353 = vrot.lane.b32.xlu0 %v349, 92
      %v354 = vpop.permute.xlu0 %353
      %355 = vrot.lane.b32.xlu0 %v350, 92
      %v356 = vpop.permute.xlu0 %355
      %v357 = vrot.slane %v354, 4
      %v358 = vrot.slane %v356, 4
      %v359 = vsel %vm273, %v357, %v358
      %vm360 = vcmask 752640
      %v361 = vsel %vm360, %v354, %v359
      %364 = vst [vmem:[#allocation3 + $0x48] sm:$0xff] %v361
      %365 = vst.msk [vmem:[#allocation3 + $0x50] sm:$0xf] %vm261, %v356
      %v366 = vld [vmem:[#allocation2] sm:$0xff]
      %v367 = vld [vmem:[#allocation2 + $0x8] sm:$0xf]
      %370 = vrot.lane.b32.xlu0 %v366, 91
      %v371 = vpop.permute.xlu0 %370
      %372 = vrot.lane.b32.xlu0 %v367, 91
      %v373 = vpop.permute.xlu0 %372
      %v374 = vrot.slane %v371, 4
      %v375 = vrot.slane %v373, 4
      %v376 = vsel %vm273, %v374, %v375
      %vm377 = vcmask 744448
      %v378 = vsel %vm377, %v371, %v376
      %381 = vst [vmem:[#allocation3 + $0x54] sm:$0xff] %v378
      %382 = vst.msk [vmem:[#allocation3 + $0x5c] sm:$0xf] %vm261, %v373
      %v383 = vld [vmem:[#allocation2] sm:$0xff]
      %v384 = vld [vmem:[#allocation2 + $0x8] sm:$0xf]
      %387 = vrot.lane.b32.xlu0 %v383, 90
      %v388 = vpop.permute.xlu0 %387
      %389 = vrot.lane.b32.xlu0 %v384, 90
      %v390 = vpop.permute.xlu0 %389
      %v391 = vrot.slane %v388, 4
      %v392 = vrot.slane %v390, 4
      %v393 = vsel %vm273, %v391, %v392
      %vm394 = vcmask 736256
      %v395 = vsel %vm394, %v388, %v393
      %398 = vst [vmem:[#allocation3 + $0x60] sm:$0xff] %v395
      %399 = vst.msk [vmem:[#allocation3 + $0x68] sm:$0xf] %vm261, %v390
      %v400 = vld [vmem:[%s2] sm:$0xf]
      %v401 = vld [vmem:[#allocation3] sm:$0xff]
      %v402 = vld [vmem:[#allocation3 + $0x8] sm:$0xf]
      %v403 = vld [vmem:[#allocation3 + $0xc] sm:$0xff]
      %v404 = vld [vmem:[#allocation3 + $0x14] sm:$0xf]
      %v405 = vld [vmem:[#allocation3 + $0x18] sm:$0xff]
      %v406 = vld [vmem:[#allocation3 + $0x20] sm:$0xf]
      %v407 = vld [vmem:[#allocation3 + $0x24] sm:$0xff]
      %v408 = vld [vmem:[#allocation3 + $0x2c] sm:$0xf]
      %v409 = vld [vmem:[#allocation3 + $0x30] sm:$0xff]
      %v410 = vld [vmem:[#allocation3 + $0x38] sm:$0xf]
      %v411 = vld [vmem:[#allocation3 + $0x3c] sm:$0xff]
      %v412 = vld [vmem:[#allocation3 + $0x44] sm:$0xf]
      %v413 = vld [vmem:[#allocation3 + $0x48] sm:$0xff]
      %v414 = vld [vmem:[#allocation3 + $0x50] sm:$0xf]
      %v415 = vld [vmem:[#allocation3 + $0x54] sm:$0xff]
      %v416 = vld [vmem:[#allocation3 + $0x5c] sm:$0xf]
      %v417 = vld [vmem:[#allocation3 + $0x60] sm:$0xff]
      %v418 = vld [vmem:[#allocation3 + $0x68] sm:$0xf]
      %v437 = vunpack.c.l.b16 %v401
      %v438 = vunpack.c.h.b16 %v401
      %v439 = vunpack.c.l.b16 %v402
      %v440 = vunpack.c.l.b16 %v403
      %v441 = vunpack.c.h.b16 %v403
      %v442 = vunpack.c.l.b16 %v404
      %v443 = vunpack.c.l.b16 %v405
      %v444 = vunpack.c.h.b16 %v405
      %v445 = vunpack.c.l.b16 %v406
      %v446 = vunpack.c.l.b16 %v407
      %v447 = vunpack.c.h.b16 %v407
      %v448 = vunpack.c.l.b16 %v408
      %v449 = vunpack.c.l.b16 %v409
      %v450 = vunpack.c.h.b16 %v409
      %v451 = vunpack.c.l.b16 %v410
      %v452 = vunpack.c.l.b16 %v411
      %v453 = vunpack.c.h.b16 %v411
      %v454 = vunpack.c.l.b16 %v412
      %v455 = vunpack.c.l.b16 %v413
      %v456 = vunpack.c.h.b16 %v413
      %v457 = vunpack.c.l.b16 %v414
      %v458 = vunpack.c.l.b16 %v415
      %v459 = vunpack.c.h.b16 %v415
      %v460 = vunpack.c.l.b16 %v416
      %v461 = vunpack.c.l.b16 %v417
      %v462 = vunpack.c.h.b16 %v417
      %v463 = vunpack.c.l.b16 %v418
      %v464 = vpack.c.b16 %v440, %v437
      %v465 = vpack.c.b16 %v441, %v438
      %v466 = vpack.c.b16 %v442, %v439
      %v467 = vpack.c.b16 %v446, %v443
      %v468 = vpack.c.b16 %v447, %v444
      %v469 = vpack.c.b16 %v448, %v445
      %v470 = vpack.c.b16 %v452, %v449
      %v471 = vpack.c.b16 %v453, %v450
      %v472 = vpack.c.b16 %v454, %v451
      %v473 = vpack.c.b16 %v458, %v455
      %v474 = vpack.c.b16 %v459, %v456
      %v475 = vpack.c.b16 %v460, %v457
      %v476 = vpack.c.b16 %v461, %v461
      %v477 = vpack.c.b16 %v462, %v462
      %v478 = vpack.c.b16 %v463, %v463
      %vm491 = vcmask 588800
      %v493 = vsel %vm491, %v400, 0
      %vm495 = vcmask 1043456
      %v497 = vsel %vm495, %v476, 0
      %v500 = vsel %vm495, %v477, 0
      %v503 = vsel %vm495, %v478, 0
      %505 = vmatpush.bf16.msra.mxu0 0
      %506 = vmatpush.bf16.msra.mxu0 0
      %507 = vmatpush.bf16.msra.mxu0 0
      %508 = vmatpush.bf16.msra.mxu0 %v497
      %509 = vmatpush.bf16.msra.mxu0 %v473
      %510 = vmatpush.bf16.msra.mxu0 %v470
      %511 = vmatpush.bf16.msra.mxu0 %v467
      %512 = vmatpush.bf16.msra.mxu0 %v464
      %513 = vmatmul.bf16.gmra.mxu0 %v493
      %v514 = vpop.f32.mrf.mxu0
      %v515 = vadd.f32 0.0, %v514
      %v516 = vpop.f32.mrf.mxu0
      %517 = vdwg.mxu0
      %518 = vmatpush.bf16.msra.mxu0 0
      %519 = vmatpush.bf16.msra.mxu0 0
      %520 = vmatpush.bf16.msra.mxu0 0
      %521 = vmatpush.bf16.msra.mxu0 %v500
      %522 = vmatpush.bf16.msra.mxu0 %v474
      %523 = vmatpush.bf16.msra.mxu0 %v471
      %524 = vmatpush.bf16.msra.mxu0 %v468
      %525 = vmatpush.bf16.msra.mxu0 %v465
      %526 = vmatmul.bf16.gmra.mxu0 %v493
      %v527 = vpop.f32.mrf.mxu0
      %v528 = vadd.f32 0.0, %v527
      %v529 = vpop.f32.mrf.mxu0
      %530 = vdwg.mxu0
      %531 = vmatpush.bf16.msra.mxu0 0
      %532 = vmatpush.bf16.msra.mxu0 0
      %533 = vmatpush.bf16.msra.mxu0 0
      %534 = vmatpush.bf16.msra.mxu0 %v503
      %535 = vmatpush.bf16.msra.mxu0 %v475
      %536 = vmatpush.bf16.msra.mxu0 %v472
      %537 = vmatpush.bf16.msra.mxu0 %v469
      %538 = vmatpush.bf16.msra.mxu0 %v466
      %539 = vmatmul.bf16.gmra.mxu0 %v493
      %v540 = vpop.f32.mrf.mxu0
      %v541 = vadd.f32 0.0, %v540
      %v542 = vpop.f32.mrf.mxu0
      %543 = vdwg.mxu0
      %544 = vst [vmem:[%s197] sm:$0xff] %v515
      %545 = vst [vmem:[%s197 + $0x8] sm:$0xff] %v528
      %vm546 = vcmask 261120
      %547 = vst.msk [vmem:[%s197 + $0x10] sm:$0xff] %vm546, %v541
      %p548 = scmp.lt.s32.totalorder %s15, 1
      %s549 = scalar_select %p548, %s15, 1
      %s550 = smul.addr %s549, 3
      %s551 = smul.addr %s550, 8
      %s552 = scalar_lea.vmem %s4, %s551
      // Predicated region
      $region37: #{nhlbi_resunet_input_block.3} parent=35 // pred_check
        %p553 = pneg %p122
      $region38: #{nhlbi_resunet_input_block.3} parent=35 // pred_check_branch
        %555 = sbr.rel (%p553) target = $region40
      $region39: #{nhlbi_resunet_input_block.3} parent=35 // pred_region
        _
      $region40: #{nhlbi_resunet_input_block.3} parent=35 // pred_fallthru
        _
    $region36: #{nhlbi_resunet_input_block.3} parent=5 // pred_fallthru
      _
    %p556 = scmp.le.s32.totalorder 2, %s10
    // Predicated region
    $region41: #{nhlbi_resunet_input_block.3} parent=5 // pred_check
      %p557 = pneg %p556
    $region42: #{nhlbi_resunet_input_block.3} parent=5 // pred_check_branch
      %559 = sbr.rel (%p557) target = $region44
    $region43: #{nhlbi_resunet_input_block.3} parent=5 // pred_region
      %s560 = ssub.s32 %s10, 2
      // Predicated region
      $region45: #{nhlbi_resunet_input_block.3} parent=43 // pred_check
        %p561 = pneg %p128
      $region46: #{nhlbi_resunet_input_block.3} parent=43 // pred_check_branch
        %563 = sbr.rel (%p561) target = $region48
      $region47: #{nhlbi_resunet_input_block.3} parent=43 // pred_region
        %p564 = scmp.lt.s32.totalorder %s16, 1
        %s565 = scalar_select %p564, %s16, 1
        %s566 = smul.addr %s565, 3
        %s567 = smul.addr %s566, 8
        %s568 = scalar_lea.vmem %s4, %s567
      $region48: #{nhlbi_resunet_input_block.3} parent=43 // pred_fallthru
        _
    $region44: #{nhlbi_resunet_input_block.3} parent=5 // pred_fallthru
      _
  $region6: #{nhlbi_resunet_input_block.3} parent=0 // loop_footer
    %s14 = sadd.s32 1, %s10
  $region7: #{nhlbi_resunet_input_block.3} parent=0 // loop_footer_branch
    %9 = sbr.rel target = $region3
  $region8: #{nhlbi_resunet_input_block.3} parent=0 // loop_exit
    _

</llo_original>
